<compile_context>
chip_gen: v5e
topology: v5e:2x2
jax: 0.10.0
libtpu: 0.0.40
codegen_flags: <defaults>
</compile_context>

<pallas_src>
import functools

import numpy as np
import jax
import jax.numpy as jnp
from jax import lax
from jax.experimental import pallas as pl
from jax.experimental.pallas import tpu as pltpu


def _round_up(x, m):
    return (x + m - 1) // m * m


def _vmem_limit_bytes():
    # Generation-aware scoped VMEM budget: v5e/v6e have 128 MiB physical VMEM,
    # v7x only 64 MiB per TensorCore.  Never request more than 3/4 of physical.
    cap = 64 * 1024 * 1024
    try:
        info = pltpu.get_tpu_info()
        cap = int(getattr(info, "vmem_capacity_bytes", cap))
    except Exception:
        pass
    return min(64 * 1024 * 1024, (cap // 4) * 3)


VMEM_LIMIT_BYTES = _vmem_limit_bytes()


# ----------------------------------------------------------------------------
# Fused matmul + bias (+ input-ReLU, + output-ReLU) kernels
# ----------------------------------------------------------------------------

def _mm_kernel_1k(a_ref, b_ref, bias_ref, o_ref, *, in_relu, out_relu):
    """Single-K-step fast path: no accumulator scratch, no pl.when."""
    a = a_ref[...]
    if in_relu:
        a = jnp.maximum(a, 0)
    out = jnp.dot(a, b_ref[...], preferred_element_type=jnp.float32) + bias_ref[...]
    if out_relu:
        out = jnp.maximum(out, 0.0)
    o_ref[...] = out.astype(o_ref.dtype)


def _mm_kernel(a_ref, b_ref, bias_ref, o_ref, acc_ref, *, in_relu, out_relu):
    """K-accumulating path (only used when K is large)."""
    k = pl.program_id(2)

    @pl.when(k == 0)
    def _():
        acc_ref[...] = jnp.zeros_like(acc_ref)

    a = a_ref[...]
    if in_relu:
        a = jnp.maximum(a, 0)
    acc_ref[...] += jnp.dot(a, b_ref[...], preferred_element_type=jnp.float32)

    @pl.when(k == pl.num_programs(2) - 1)
    def _():
        out = acc_ref[...] + bias_ref[...]
        if out_relu:
            out = jnp.maximum(out, 0.0)
        o_ref[...] = out.astype(o_ref.dtype)


def matmul_bias(a, w_p, bias_p, *, in_relu=False, out_relu=False,
                out_dtype=jnp.bfloat16):
    """(M,K) @ (K,N_pad) + bias[1,N_pad] with fused ReLUs.

    w_p / bias_p are pre-padded (lane-dense N, multiple of 128) and pre-cast
    (bf16 weight, f32 bias) by prepare_params().  Returns (M, N_pad).
    """
    M, K = a.shape
    K2, N_pad = w_p.shape
    assert K == K2 and N_pad % 128 == 0

    # --- tile selection ------------------------------------------------------
    if M > 512:
        tm = 512
        M_pad = _round_up(M, tm)
    else:
        M_pad = _round_up(M, 8)
        tm = M_pad
    tn = 256 if N_pad % 256 == 0 else 128   # 256-wide MXUs on v6e/v7x
    tn = min(tn, N_pad)
    if K > 2048:
        tk = 1024
        K_pad = _round_up(K, tk)
    else:
        tk = K
        K_pad = K

    if a.dtype != jnp.bfloat16:
        a = a.astype(jnp.bfloat16)
    if M_pad != M or K_pad != K:
        a = jnp.pad(a, ((0, M_pad - M), (0, K_pad - K)))
    if K_pad != K:
        w_p = jnp.pad(w_p, ((0, K_pad - K), (0, 0)))

    nk = K_pad // tk
    if nk == 1:
        out = pl.pallas_call(
            functools.partial(_mm_kernel_1k, in_relu=in_relu, out_relu=out_relu),
            out_shape=jax.ShapeDtypeStruct((M_pad, N_pad), out_dtype),
            grid=(M_pad // tm, N_pad // tn),
            in_specs=[pl.BlockSpec((tm, K_pad), lambda i, j: (i, 0)),
                      pl.BlockSpec((K_pad, tn), lambda i, j: (0, j)),
                      pl.BlockSpec((1, tn), lambda i, j: (0, j))],
            out_specs=pl.BlockSpec((tm, tn), lambda i, j: (i, j)),
            compiler_params=pltpu.CompilerParams(
                dimension_semantics=("parallel", "parallel"),
                vmem_limit_bytes=VMEM_LIMIT_BYTES),
        )(a, w_p, bias_p)
    else:
        out = pl.pallas_call(
            functools.partial(_mm_kernel, in_relu=in_relu, out_relu=out_relu),
            out_shape=jax.ShapeDtypeStruct((M_pad, N_pad), out_dtype),
            grid=(M_pad // tm, N_pad // tn, nk),
            in_specs=[pl.BlockSpec((tm, tk), lambda i, j, k: (i, k)),
                      pl.BlockSpec((tk, tn), lambda i, j, k: (k, j)),
                      pl.BlockSpec((1, tn), lambda i, j, k: (0, j))],
            out_specs=pl.BlockSpec((tm, tn), lambda i, j, k: (i, j)),
            scratch_shapes=[pltpu.VMEM((tm, tn), jnp.float32)],
            compiler_params=pltpu.CompilerParams(
                dimension_semantics=("parallel", "parallel", "arbitrary"),
                vmem_limit_bytes=VMEM_LIMIT_BYTES),
        )(a, w_p, bias_p)
    return out[:M] if M_pad != M else out


# ----------------------------------------------------------------------------
# Fused residual block kernel: ReLU -> 3x3 conv -> ReLU -> 1x1 conv -> +skip
# ----------------------------------------------------------------------------

def _resblock_kernel(col_ref, w1_ref, b1_ref, w2_ref, b2_ref, skip_ref, o_ref):
    a = jnp.maximum(col_ref[...], 0)                       # ReLU on input patches
    h = jnp.dot(a, w1_ref[...], preferred_element_type=jnp.float32)
    h = jnp.maximum(h + b1_ref[...], 0.0)                  # 3x3 conv -> ReLU
    h2 = jnp.dot(h.astype(jnp.bfloat16), w2_ref[...],
                 preferred_element_type=jnp.float32)       # 1x1 conv
    out = h2 + b2_ref[...] + skip_ref[...].astype(jnp.float32)
    o_ref[...] = out.astype(o_ref.dtype)


def residual_block(x, rp):
    B, H, W, C = x.shape
    col, _, _ = _im2col(x, rp["kh"], rp["kw"], 1, (rp["kh"] - 1) // 2)
    M = B * H * W
    K1 = col.shape[1]
    rhp = rp["w1"].shape[1]
    chp = rp["chp"]
    if M > 512:
        tm = 512
        M_pad = _round_up(M, tm)
    else:
        M_pad = _round_up(M, 8)
        tm = M_pad
    skip = jnp.pad(x.reshape(M, C), ((0, M_pad - M), (0, chp - C)))
    if M_pad != M:
        col = jnp.pad(col, ((0, M_pad - M), (0, 0)))

    out = pl.pallas_call(
        _resblock_kernel,
        out_shape=jax.ShapeDtypeStruct((M_pad, chp), jnp.bfloat16),
        grid=(M_pad // tm,),
        in_specs=[pl.BlockSpec((tm, K1), lambda i: (i, 0)),
                  pl.BlockSpec((K1, rhp), lambda i: (0, 0)),
                  pl.BlockSpec((1, rhp), lambda i: (0, 0)),
                  pl.BlockSpec((rhp, chp), lambda i: (0, 0)),
                  pl.BlockSpec((1, chp), lambda i: (0, 0)),
                  pl.BlockSpec((tm, chp), lambda i: (i, 0))],
        out_specs=pl.BlockSpec((tm, chp), lambda i: (i, 0)),
        compiler_params=pltpu.CompilerParams(
            dimension_semantics=("parallel",),
            vmem_limit_bytes=VMEM_LIMIT_BYTES),
    )(col, rp["w1"], rp["b1"], rp["w2"], rp["b2"], skip)
    return out[:M, :C].reshape(B, H, W, C)


def residual_stack(x, layers):
    # Final stack ReLU is deferred to the consumer (fused as in_relu there).
    for rp in layers:
        x = residual_block(x, rp)
    return x


# ----------------------------------------------------------------------------
# Fused pre-VQ 1x1 conv + EMA vector quantizer (inference forward)
# ----------------------------------------------------------------------------

def _prevq_vq_kernel(z_ref, w_ref, bvq_ref, e_ref, esq_ref,
                     q_ref, loss_ref, perp_ref, cnt_ref, *,
                     commitment_cost, m_total, d_real, ne_real):
    m = pl.program_id(0)
    tm = z_ref.shape[0]
    nep = e_ref.shape[0]

    @pl.when(m == 0)
    def _():
        cnt_ref[...] = jnp.zeros_like(cnt_ref)
        loss_ref[...] = jnp.zeros_like(loss_ref)

    # fused pre-VQ 1x1 conv: relu(encoder output) @ W + b (bf16 feeds, f32 acc)
    a = jnp.maximum(z_ref[...], 0)
    z = jnp.dot(a, w_ref[...], preferred_element_type=jnp.float32) + bvq_ref[...]

    e = e_ref[...]                                        # (Nep, Dp) f32, resident
    z_sq = jnp.sum(z * z, axis=1, keepdims=True)          # (tm, 1)
    # trans_b contraction — no codebook transpose / relayout in the kernel.
    cross = lax.dot_general(z, e, (((1,), (1,)), ((), ())),
                            preferred_element_type=jnp.float32)
    d = z_sq + esq_ref[...] - 2.0 * cross                 # (tm, Nep)

    col = lax.broadcasted_iota(jnp.int32, (tm, nep), 1)
    # Padded codes get their distance REPLACED by a large sentinel (no add, so
    # no f32 overflow) — they can never win the argmin.
    d = jnp.where(col < ne_real, d, 3.0e38)

    min_d = jnp.min(d, axis=1, keepdims=True)
    idx = jnp.min(jnp.where(d <= min_d, col, nep), axis=1, keepdims=True)
    onehot = (col == idx).astype(jnp.float32)             # (tm, Nep)

    q = jnp.dot(onehot, e, preferred_element_type=jnp.float32)   # (tm, Dp)
    q_ref[...] = q.astype(q_ref.dtype)

    # cross-tile accumulation (mask padded rows)
    row = m * tm + lax.broadcasted_iota(jnp.int32, (tm, 1), 0)
    valid = (row < m_total).astype(jnp.float32)
    cnt_ref[...] = cnt_ref[...] + jnp.sum(onehot * valid, axis=0, keepdims=True)
    diff = (q - z) * valid
    loss_ref[...] = loss_ref[...] + jnp.reshape(jnp.sum(diff * diff), (1, 1))

    @pl.when(m == pl.num_programs(0) - 1)
    def _():
        loss_ref[...] = loss_ref[...] * (commitment_cost / (m_total * d_real))
        avg = cnt_ref[...] * (1.0 / m_total)
        perp = jnp.exp(-jnp.sum(avg * jnp.log(avg + 1e-10)))
        perp_ref[...] = jnp.reshape(perp, (1, 1))


def prevq_vq(z_enc_flat, vqp, commitment_cost):
    # TODO(synk): the EMA codebook update and the straight-through estimator are
    # training-only; the inference forward value is q (plus loss/perplexity).
    M, Kz = z_enc_flat.shape
    Kz2, Dp = vqp["w"].shape
    assert Kz == Kz2
    Nep = vqp["e"].shape[0]
    D, Ne = vqp["d"], vqp["ne"]

    if M > 512:
        tm = 512
        M_pad = _round_up(M, tm)
    else:
        M_pad = _round_up(M, 8)
        tm = M_pad
    z_p = z_enc_flat if M_pad == M else jnp.pad(z_enc_flat, ((0, M_pad - M), (0, 0)))

    q, loss, perp = pl.pallas_call(
        functools.partial(_prevq_vq_kernel, commitment_cost=float(commitment_cost),
                          m_total=M, d_real=D, ne_real=Ne),
        out_shape=(jax.ShapeDtypeStruct((M_pad, Dp), jnp.bfloat16),
                   jax.ShapeDtypeStruct((1, 1), jnp.float32),
                   jax.ShapeDtypeStruct((1, 1), jnp.float32)),
        grid=(M_pad // tm,),
        in_specs=[pl.BlockSpec((tm, Kz), lambda m: (m, 0)),
                  pl.BlockSpec((Kz, Dp), lambda m: (0, 0)),     # resident weights
                  pl.BlockSpec((1, Dp), lambda m: (0, 0)),
                  pl.BlockSpec((Nep, Dp), lambda m: (0, 0)),    # resident codebook
                  pl.BlockSpec((1, Nep), lambda m: (0, 0))],    # precomputed sum(e^2)
        out_specs=(pl.BlockSpec((tm, Dp), lambda m: (m, 0)),
                   pl.BlockSpec((1, 1), lambda m: (0, 0)),
                   pl.BlockSpec((1, 1), lambda m: (0, 0))),
        scratch_shapes=[pltpu.VMEM((1, Nep), jnp.float32)],
        compiler_params=pltpu.CompilerParams(
            dimension_semantics=("arbitrary",),
            vmem_limit_bytes=VMEM_LIMIT_BYTES),
    )(z_p, vqp["w"], vqp["b"], vqp["e"], vqp["esq"])
    return loss[0, 0], q[:M, :D], perp[0, 0]


# ----------------------------------------------------------------------------
# Conv / ConvTranspose (NHWC) lowered onto the fused Pallas matmul
# ----------------------------------------------------------------------------

def _im2col(x, kh, kw, stride, padding):
    """Channel-last patch gather.  TODO(synk): fold into the kernel's tile DMA
    (shifted index_maps over the padded NHWC tensor) to remove the HBM col."""
    B, H, W, C = x.shape
    Ho = (H + 2 * padding - kh) // stride + 1
    Wo = (W + 2 * padding - kw) // stride + 1
    if kh == 1 and kw == 1 and stride == 1 and padding == 0:
        return x.reshape(B * H * W, C), Ho, Wo
    xp = x if padding == 0 else jnp.pad(
        x, ((0, 0), (padding, padding), (padding, padding), (0, 0)))
    patches = [xp[:, i:i + stride * Ho:stride, j:j + stride * Wo:stride, :]
               for i in range(kh) for j in range(kw)]
    col = jnp.stack(patches, axis=3).reshape(B * Ho * Wo, kh * kw * C)
    return col, Ho, Wo


def conv2d(x, cp, *, stride=1, padding=0, in_relu=False, out_relu=False,
           out_dtype=jnp.bfloat16):
    B = x.shape[0]
    col, Ho, Wo = _im2col(x, cp["kh"], cp["kw"], stride, padding)
    out = matmul_bias(col, cp["wmat"], cp["bias"], in_relu=in_relu,
                      out_relu=out_relu, out_dtype=out_dtype)
    return out[:, :cp["cout"]].reshape(B, Ho, Wo, cp["cout"])


def conv_transpose2d(x, cp, *, in_relu=False, out_relu=False,
                     out_dtype=jnp.bfloat16):
    """Output-phase-decomposed transposed conv (no zero-stuffed input)."""
    B, H, W, C = x.shape
    s, p, kh = cp["s"], cp["p"], cp["kh"]
    K, pad_left, op = cp["K"], cp["pad_left"], cp["output_padding"]
    cout = cp["cout"]
    Ho = (H - 1) * s - 2 * p + kh + op
    Wo = (W - 1) * s - 2 * p + cp["kw"] + op
    Hq = -(-Ho // s)
    Wq = -(-Wo // s)
    pad_rh = max(0, Hq + K - 1 - H - pad_left)
    pad_rw = max(0, Wq + K - 1 - W - pad_left)
    xp = x
    if pad_left or pad_rh or pad_rw:
        xp = jnp.pad(x, ((0, 0), (pad_left, pad_rh), (pad_left, pad_rw), (0, 0)))

    patches = [xp[:, i:i + Hq, j:j + Wq, :] for i in range(K) for j in range(K)]
    col = jnp.stack(patches, axis=3).reshape(B * Hq * Wq, K * K * C)

    out = matmul_bias(col, cp["wmat"], cp["bias"], in_relu=in_relu,
                      out_relu=out_relu, out_dtype=out_dtype)
    out = out[:, :s * s * cout].reshape(B, Hq, Wq, s, s, cout)
    out = out.transpose(0, 1, 3, 2, 4, 5).reshape(B, Hq * s, Wq * s, cout)
    return out[:, :Ho, :Wo, :]


# ----------------------------------------------------------------------------
# One-time parameter preparation (numpy, outside the per-forward jit path)
# ----------------------------------------------------------------------------

def _np(x, dt=np.float32):
    return np.asarray(jax.device_get(x), dt)


def _prep_conv(w, b):
    w, b = _np(w), _np(b)
    cout, cin, kh, kw = w.shape
    wmat = np.transpose(w, (2, 3, 1, 0)).reshape(kh * kw * cin, cout)
    n_pad = _round_up(cout, 128)
    wp = np.zeros((kh * kw * cin, n_pad), np.float32); wp[:, :cout] = wmat
    bp = np.zeros((1, n_pad), np.float32); bp[0, :cout] = b
    return dict(wmat=jnp.asarray(wp, jnp.bfloat16), bias=jnp.asarray(bp),
                kh=kh, kw=kw, cout=cout)


def _prep_resblock(layer):
    w1, b1 = _np(layer["w1"]), _np(layer["b1"])   # (rh, ch, 3, 3)
    w2, b2 = _np(layer["w2"]), _np(layer["b2"])   # (ch, rh, 1, 1)
    rh, ch, kh, kw = w1.shape
    rhp, chp = _round_up(rh, 128), _round_up(ch, 128)
    w1m = np.transpose(w1, (2, 3, 1, 0)).reshape(kh * kw * ch, rh)
    w1p = np.zeros((kh * kw * ch, rhp), np.float32); w1p[:, :rh] = w1m
    b1p = np.zeros((1, rhp), np.float32); b1p[0, :rh] = b1
    w2m = np.transpose(w2, (2, 3, 1, 0)).reshape(rh, ch)
    w2p = np.zeros((rhp, chp), np.float32); w2p[:rh, :ch] = w2m
    b2p = np.zeros((1, chp), np.float32); b2p[0, :ch] = b2
    return dict(w1=jnp.asarray(w1p, jnp.bfloat16), b1=jnp.asarray(b1p),
                w2=jnp.asarray(w2p, jnp.bfloat16), b2=jnp.asarray(b2p),
                ch=ch, chp=chp, kh=kh, kw=kw)


def _prep_conv_transpose(w, b, stride, padding, output_padding):
    w, b = _np(w), _np(b)                          # (Cin, Cout, kh, kw)
    cin, cout, kh, kw = w.shape
    s, p = stride, padding
    pad_left = -(-(kh - 1 - p) // s)               # ceil((kh-1-p)/s)
    assert pad_left >= 0
    K = pad_left + (s - 1 + p) // s + 1            # shared window size per dim
    # Embed the s*s phase sub-kernels into one (K*K*Cin, s*s*Cout) matrix.
    wemb = np.zeros((K, K, cin, s, s, cout), np.float32)
    for rh in range(s):
        for uh in range(K):
            ki = rh + p + s * pad_left - s * uh
            if not (0 <= ki < kh):
                continue
            for rw in range(s):
                for uw in range(K):
                    kj = rw + p + s * pad_left - s * uw
                    if not (0 <= kj < kw):
                        continue
                    wemb[uh, uw, :, rh, rw, :] = w[:, :, ki, kj]
    wmat = wemb.reshape(K * K * cin, s * s * cout)
    n = s * s * cout
    n_pad = _round_up(n, 128)
    wp = np.zeros((K * K * cin, n_pad), np.float32); wp[:, :n] = wmat
    bp = np.zeros((1, n_pad), np.float32); bp[0, :n] = np.tile(b, s * s)
    return dict(wmat=jnp.asarray(wp, jnp.bfloat16), bias=jnp.asarray(bp),
                kh=kh, kw=kw, cout=cout, s=s, p=p, K=K, pad_left=pad_left,
                output_padding=output_padding)


def _prep_prevq_vq(w, b, codebook):
    w, b, e = _np(w), _np(b), _np(codebook)        # (D, Kin, 1, 1), (D,), (Ne, D)
    D, kin = w.shape[0], w.shape[1]
    ne = e.shape[0]
    dp, nep = _round_up(D, 128), _round_up(ne, 128)
    wm = np.transpose(w, (2, 3, 1, 0)).reshape(kin, D)
    wp = np.zeros((kin, dp), np.float32); wp[:, :D] = wm
    bp = np.zeros((1, dp), np.float32); bp[0, :D] = b
    ep = np.zeros((nep, dp), np.float32); ep[:ne, :D] = e
    esq = np.zeros((1, nep), np.float32); esq[0, :ne] = np.sum(e * e, axis=1)
    return dict(w=jnp.asarray(wp, jnp.bfloat16), b=jnp.asarray(bp),
                e=jnp.asarray(ep), esq=jnp.asarray(esq), d=D, ne=ne)


def prepare_params(raw, cfg):
    enc, dec = raw["encoder"], raw["decoder"]
    return dict(
        encoder=dict(
            conv1=_prep_conv(enc["conv1_w"], enc["conv1_b"]),
            conv2=_prep_conv(enc["conv2_w"], enc["conv2_b"]),
            conv3=_prep_conv(enc["conv3_w"], enc["conv3_b"]),
            res=[_prep_resblock(l) for l in enc["res"]["layers"]]),
        vq=_prep_prevq_vq(raw["pre_vq_w"], raw["pre_vq_b"], raw["codebook"]),
        decoder=dict(
            conv1=_prep_conv(dec["conv1_w"], dec["conv1_b"]),
            res=[_prep_resblock(l) for l in dec["res"]["layers"]],
            convt1=_prep_conv_transpose(dec["convt1_w"], dec["convt1_b"],
                                        2, 1, cfg["output_padding"]),
            convt2=_prep_conv_transpose(dec["convt2_w"], dec["convt2_b"], 2, 1, 0)))


# ----------------------------------------------------------------------------
# Model_sep forward (encoder -> pre-VQ conv + VQ-EMA -> decoder)
# ----------------------------------------------------------------------------

def encoder_bev(x, p):
    x = conv2d(x, p["conv1"], stride=2, padding=1, out_relu=True)
    x = conv2d(x, p["conv2"], stride=2, padding=1, out_relu=True)
    x = conv2d(x, p["conv3"], stride=1, padding=1)
    return residual_stack(x, p["res"])          # final ReLU deferred to consumer


def decoder_bev(x, p):
    x = conv2d(x, p["conv1"], stride=1, padding=1)
    x = residual_stack(x, p["res"])
    x = conv_transpose2d(x, p["convt1"], in_relu=True, out_relu=True)
    x = conv_transpose2d(x, p["convt2"], out_dtype=jnp.float32)
    return x


def model_sep_forward(prep, bev, cfg):
    B = bev.shape[0]
    x = jnp.transpose(bev, (0, 2, 3, 1)).astype(jnp.bfloat16)    # NCHW -> NHWC
    z = encoder_bev(x, prep["encoder"])                          # (B,Hl,Wl,h)
    _, Hl, Wl, Ch = z.shape

    # TODO(synk): Encoder_bev_sep's spatial->channel flatten order is not given;
    # NHWC-native (h,w,c) order is used here, consistently with init_params.
    z_flat = z.reshape(B, Hl * Wl * Ch)
    loss, q_flat, perplexity = prevq_vq(z_flat, prep["vq"], cfg["commitment_cost"])

    # TODO(synk): decoder latent unflatten order is likewise a reconstruction.
    D = cfg["embedding_dim"]
    dq = q_flat.reshape(B, Hl, Wl, D // cfg["cir"])
    recon = decoder_bev(dq, prep["decoder"])
    return loss, jnp.transpose(recon, (0, 3, 1, 2)), perplexity  # back to NCHW


# ----------------------------------------------------------------------------
# Deterministic parameter init (raw PyTorch-layout weights)
# ----------------------------------------------------------------------------

def init_params(key, cfg):
    in_ch = cfg["in_channels"]
    h = cfg["num_hiddens"]
    rh = cfg["num_res_hiddens"]
    nlayers = cfg["num_res_layers"]
    D = cfg["embedding_dim"]
    Ne = cfg["num_embeddings"]
    cir = cfg["cir"]

    keys = iter(jax.random.split(key, 64))

    def nrm(shape, scale=0.05):
        return scale * jax.random.normal(next(keys), shape, jnp.float32)

    def res_params(ch):
        layers = []
        for _ in range(nlayers):
            layers.append(dict(
                w1=nrm((rh, ch, 3, 3)), b1=jnp.zeros((rh,), jnp.float32),
                w2=nrm((ch, rh, 1, 1)), b2=jnp.zeros((ch,), jnp.float32)))
        return dict(layers=layers)

    encoder = dict(
        conv1_w=nrm((h // 2, in_ch, 4, 4)), conv1_b=nrm((h // 2,)),
        conv2_w=nrm((h, h // 2, 4, 4)), conv2_b=nrm((h,)),
        conv3_w=nrm((h, h, 3, 3)), conv3_b=nrm((h,)),
        res=res_params(h))

    dec_in = D // cir
    decoder = dict(
        conv1_w=nrm((h, dec_in, 3, 3)), conv1_b=nrm((h,)),
        res=res_params(h),
        convt1_w=nrm((h, h // 2, 4, 4)), convt1_b=nrm((h // 2,)),   # (Cin,Cout,kh,kw)
        convt2_w=nrm((h // 2, in_ch, 4, 4)), convt2_b=nrm((in_ch,)))

    return dict(
        encoder=encoder,
        pre_vq_w=nrm((D, h * cir, 1, 1)), pre_vq_b=nrm((D,)),
        codebook=jax.random.uniform(next(keys), (Ne, D), jnp.float32,
                                    -1.0 / Ne, 1.0 / Ne),
        decoder=decoder)


# ----------------------------------------------------------------------------
# Demo
# ----------------------------------------------------------------------------

if __name__ == "__main__":
    # Module constructor args (small, consistent shapes):
    #   num_hiddens=[8], num_residual_layers=[1], num_residual_hiddens=[8],
    #   num_embeddings=[16], embedding_dim=[32], output_padding=[0],
    #   commitment_cost=0.25, img_shape=(16,16), dim_ratio=4,
    #   channel_type has 3 entries, decay=0.99 (EMA quantizer path).
    img_shape = (16, 16)
    dim_ratio = 4
    cir = (img_shape[0] // dim_ratio) * (img_shape[1] // dim_ratio)   # 16
    cfg = dict(
        in_channels=3,
        num_hiddens=8,
        num_res_layers=1,
        num_res_hiddens=8,
        num_embeddings=16,
        embedding_dim=32,
        output_padding=0,
        commitment_cost=0.25,
        cir=cir,
    )

    key = jax.random.PRNGKey(0)
    kp, kx = jax.random.split(key)
    raw_params = init_params(kp, cfg)
    prep = prepare_params(raw_params, cfg)          # one-time weight prep (numpy)
    bev = jax.random.normal(kx, (2, cfg["in_channels"], *img_shape), jnp.float32)

    fwd = jax.jit(functools.partial(model_sep_forward, prep, cfg=cfg))
    loss, bev_recon, perplexity = fwd(bev)
    jax.block_until_ready((loss, bev_recon, perplexity))

    assert bev_recon.shape == (2, cfg["in_channels"], *img_shape)
    assert loss.shape == () and perplexity.shape == ()
    print("KERNEL_OK")
</pallas_src>

<mosaic_0001>
module attributes {stable_mosaic.version = 11 : i64} {
  func.func @_mm_kernel_1k(%arg0: i32, %arg1: i32, %arg2: memref<128x48xbf16, #tpu.memory_space<vmem>>, %arg3: memref<48x128xbf16, #tpu.memory_space<vmem>>, %arg4: memref<1x128xf32, #tpu.memory_space<vmem>>, %arg5: memref<128x128xbf16, #tpu.memory_space<vmem>>) attributes {dimension_semantics = [#tpu.dimension_semantics<parallel>, #tpu.dimension_semantics<parallel>], iteration_bounds = array<i64: 1, 1>, scalar_prefetch = 0 : i64, scratch_operands = 0 : i64, tpu.core_type = #tpu.core_type<tc>, window_params = [{transform_indices = @transform_0, window_bounds = array<i64: 128, 48>}, {transform_indices = @transform_1, window_bounds = array<i64: 48, 128>}, {transform_indices = @transform_2, window_bounds = array<i64: 1, 128>}, {transform_indices = @transform_3, window_bounds = array<i64: 128, 128>}]} {
    %c0 = arith.constant 0 : index
    %c0_0 = arith.constant 0 : index
    %0 = vector.load %arg2[%c0, %c0_0] : memref<128x48xbf16, #tpu.memory_space<vmem>>, vector<128x48xbf16>
    %c0_1 = arith.constant 0 : index
    %c0_2 = arith.constant 0 : index
    %1 = vector.load %arg3[%c0_1, %c0_2] : memref<48x128xbf16, #tpu.memory_space<vmem>>, vector<48x128xbf16>
    %cst = arith.constant dense<0.000000e+00> : vector<128x128xf32>
    %2 = tpu.matmul %0, %1, %cst {dimension_numbers = #tpu.dot_dimension_numbers<[1], [0], [0], [1], [0, 0, 1, 1], [], []>} : vector<128x48xbf16>, vector<48x128xbf16>, vector<128x128xf32> -> vector<128x128xf32>
    %c0_3 = arith.constant 0 : index
    %c0_4 = arith.constant 0 : index
    %3 = vector.load %arg4[%c0_3, %c0_4] : memref<1x128xf32, #tpu.memory_space<vmem>>, vector<1x128xf32>
    %4 = vector.broadcast %3 : vector<1x128xf32> to vector<128x128xf32>
    %5 = arith.addf %2, %4 : vector<128x128xf32>
    %cst_5 = arith.constant 0.000000e+00 : f32
    %6 = vector.broadcast %cst_5 : f32 to vector<128x128xf32>
    %7 = arith.maximumf %5, %6 : vector<128x128xf32>
    %8 = arith.truncf %7 : vector<128x128xf32> to vector<128x128xbf16>
    %c0_6 = arith.constant 0 : index
    %c0_7 = arith.constant 0 : index
    %9 = vector.load %arg5[%c0_6, %c0_7] : memref<128x128xbf16, #tpu.memory_space<vmem>>, vector<128x128xbf16>
    tpu.vector_store %arg5[%c0_6, %c0_7], %8 {strides = array<i32>} : memref<128x128xbf16, #tpu.memory_space<vmem>>, vector<128x128xbf16>,
    return
  }
  func.func @transform_0(%arg0: i32, %arg1: i32) -> (i32, i32) {
    %c0_i32 = arith.constant 0 : i32
    %c0_i32_0 = arith.constant 0 : i32
    return %arg0, %c0_i32 : i32, i32
  }
  func.func @transform_1(%arg0: i32, %arg1: i32) -> (i32, i32) {
    %c0_i32 = arith.constant 0 : i32
    %c0_i32_0 = arith.constant 0 : i32
    return %c0_i32, %arg1 : i32, i32
  }
  func.func @transform_2(%arg0: i32, %arg1: i32) -> (i32, i32) {
    %c0_i32 = arith.constant 0 : i32
    %c0_i32_0 = arith.constant 0 : i32
    return %c0_i32, %arg1 : i32, i32
  }
  func.func @transform_3(%arg0: i32, %arg1: i32) -> (i32, i32) {
    %c0_i32 = arith.constant 0 : i32
    return %arg0, %arg1 : i32, i32
  }
}

module attributes {stable_mosaic.version = 11 : i64} {
  func.func @_mm_kernel_1k(%arg0: i32, %arg1: i32, %arg2: memref<32x64xbf16, #tpu.memory_space<vmem>>, %arg3: memref<64x128xbf16, #tpu.memory_space<vmem>>, %arg4: memref<1x128xf32, #tpu.memory_space<vmem>>, %arg5: memref<32x128xbf16, #tpu.memory_space<vmem>>) attributes {dimension_semantics = [#tpu.dimension_semantics<parallel>, #tpu.dimension_semantics<parallel>], iteration_bounds = array<i64: 1, 1>, scalar_prefetch = 0 : i64, scratch_operands = 0 : i64, tpu.core_type = #tpu.core_type<tc>, window_params = [{transform_indices = @transform_0, window_bounds = array<i64: 32, 64>}, {transform_indices = @transform_1, window_bounds = array<i64: 64, 128>}, {transform_indices = @transform_2, window_bounds = array<i64: 1, 128>}, {transform_indices = @transform_3, window_bounds = array<i64: 32, 128>}]} {
    %c0 = arith.constant 0 : index
    %c0_0 = arith.constant 0 : index
    %0 = vector.load %arg2[%c0, %c0_0] : memref<32x64xbf16, #tpu.memory_space<vmem>>, vector<32x64xbf16>
    %c0_1 = arith.constant 0 : index
    %c0_2 = arith.constant 0 : index
    %1 = vector.load %arg3[%c0_1, %c0_2] : memref<64x128xbf16, #tpu.memory_space<vmem>>, vector<64x128xbf16>
    %cst = arith.constant dense<0.000000e+00> : vector<32x128xf32>
    %2 = tpu.matmul %0, %1, %cst {dimension_numbers = #tpu.dot_dimension_numbers<[1], [0], [0], [1], [0, 0, 1, 1], [], []>} : vector<32x64xbf16>, vector<64x128xbf16>, vector<32x128xf32> -> vector<32x128xf32>
    %c0_3 = arith.constant 0 : index
    %c0_4 = arith.constant 0 : index
    %3 = vector.load %arg4[%c0_3, %c0_4] : memref<1x128xf32, #tpu.memory_space<vmem>>, vector<1x128xf32>
    %4 = vector.broadcast %3 : vector<1x128xf32> to vector<32x128xf32>
    %5 = arith.addf %2, %4 : vector<32x128xf32>
    %cst_5 = arith.constant 0.000000e+00 : f32
    %6 = vector.broadcast %cst_5 : f32 to vector<32x128xf32>
    %7 = arith.maximumf %5, %6 : vector<32x128xf32>
    %8 = arith.truncf %7 : vector<32x128xf32> to vector<32x128xbf16>
    %c0_6 = arith.constant 0 : index
    %c0_7 = arith.constant 0 : index
    %9 = vector.load %arg5[%c0_6, %c0_7] : memref<32x128xbf16, #tpu.memory_space<vmem>>, vector<32x128xbf16>
    tpu.vector_store %arg5[%c0_6, %c0_7], %8 {strides = array<i32>} : memref<32x128xbf16, #tpu.memory_space<vmem>>, vector<32x128xbf16>,
    return
  }
  func.func @transform_0(%arg0: i32, %arg1: i32) -> (i32, i32) {
    %c0_i32 = arith.constant 0 : i32
    %c0_i32_0 = arith.constant 0 : i32
    return %arg0, %c0_i32 : i32, i32
  }
  func.func @transform_1(%arg0: i32, %arg1: i32) -> (i32, i32) {
    %c0_i32 = arith.constant 0 : i32
    %c0_i32_0 = arith.constant 0 : i32
    return %c0_i32, %arg1 : i32, i32
  }
  func.func @transform_2(%arg0: i32, %arg1: i32) -> (i32, i32) {
    %c0_i32 = arith.constant 0 : i32
    %c0_i32_0 = arith.constant 0 : i32
    return %c0_i32, %arg1 : i32, i32
  }
  func.func @transform_3(%arg0: i32, %arg1: i32) -> (i32, i32) {
    %c0_i32 = arith.constant 0 : i32
    return %arg0, %arg1 : i32, i32
  }
}

module attributes {stable_mosaic.version = 11 : i64} {
  func.func @_mm_kernel_1k(%arg0: i32, %arg1: i32, %arg2: memref<32x72xbf16, #tpu.memory_space<vmem>>, %arg3: memref<72x128xbf16, #tpu.memory_space<vmem>>, %arg4: memref<1x128xf32, #tpu.memory_space<vmem>>, %arg5: memref<32x128xbf16, #tpu.memory_space<vmem>>) attributes {dimension_semantics = [#tpu.dimension_semantics<parallel>, #tpu.dimension_semantics<parallel>], iteration_bounds = array<i64: 1, 1>, scalar_prefetch = 0 : i64, scratch_operands = 0 : i64, tpu.core_type = #tpu.core_type<tc>, window_params = [{transform_indices = @transform_0, window_bounds = array<i64: 32, 72>}, {transform_indices = @transform_1, window_bounds = array<i64: 72, 128>}, {transform_indices = @transform_2, window_bounds = array<i64: 1, 128>}, {transform_indices = @transform_3, window_bounds = array<i64: 32, 128>}]} {
    %c0 = arith.constant 0 : index
    %c0_0 = arith.constant 0 : index
    %0 = vector.load %arg2[%c0, %c0_0] : memref<32x72xbf16, #tpu.memory_space<vmem>>, vector<32x72xbf16>
    %c0_1 = arith.constant 0 : index
    %c0_2 = arith.constant 0 : index
    %1 = vector.load %arg3[%c0_1, %c0_2] : memref<72x128xbf16, #tpu.memory_space<vmem>>, vector<72x128xbf16>
    %cst = arith.constant dense<0.000000e+00> : vector<32x128xf32>
    %2 = tpu.matmul %0, %1, %cst {dimension_numbers = #tpu.dot_dimension_numbers<[1], [0], [0], [1], [0, 0, 1, 1], [], []>} : vector<32x72xbf16>, vector<72x128xbf16>, vector<32x128xf32> -> vector<32x128xf32>
    %c0_3 = arith.constant 0 : index
    %c0_4 = arith.constant 0 : index
    %3 = vector.load %arg4[%c0_3, %c0_4] : memref<1x128xf32, #tpu.memory_space<vmem>>, vector<1x128xf32>
    %4 = vector.broadcast %3 : vector<1x128xf32> to vector<32x128xf32>
    %5 = arith.addf %2, %4 : vector<32x128xf32>
    %6 = arith.truncf %5 : vector<32x128xf32> to vector<32x128xbf16>
    %c0_5 = arith.constant 0 : index
    %c0_6 = arith.constant 0 : index
    %7 = vector.load %arg5[%c0_5, %c0_6] : memref<32x128xbf16, #tpu.memory_space<vmem>>, vector<32x128xbf16>
    tpu.vector_store %arg5[%c0_5, %c0_6], %6 {strides = array<i32>} : memref<32x128xbf16, #tpu.memory_space<vmem>>, vector<32x128xbf16>,
    return
  }
  func.func @transform_0(%arg0: i32, %arg1: i32) -> (i32, i32) {
    %c0_i32 = arith.constant 0 : i32
    %c0_i32_0 = arith.constant 0 : i32
    return %arg0, %c0_i32 : i32, i32
  }
  func.func @transform_1(%arg0: i32, %arg1: i32) -> (i32, i32) {
    %c0_i32 = arith.constant 0 : i32
    %c0_i32_0 = arith.constant 0 : i32
    return %c0_i32, %arg1 : i32, i32
  }
  func.func @transform_2(%arg0: i32, %arg1: i32) -> (i32, i32) {
    %c0_i32 = arith.constant 0 : i32
    %c0_i32_0 = arith.constant 0 : i32
    return %c0_i32, %arg1 : i32, i32
  }
  func.func @transform_3(%arg0: i32, %arg1: i32) -> (i32, i32) {
    %c0_i32 = arith.constant 0 : i32
    return %arg0, %arg1 : i32, i32
  }
}

module attributes {stable_mosaic.version = 11 : i64} {
  func.func @_resblock_kernel(%arg0: i32, %arg1: memref<32x72xbf16, #tpu.memory_space<vmem>>, %arg2: memref<72x128xbf16, #tpu.memory_space<vmem>>, %arg3: memref<1x128xf32, #tpu.memory_space<vmem>>, %arg4: memref<128x128xbf16, #tpu.memory_space<vmem>>, %arg5: memref<1x128xf32, #tpu.memory_space<vmem>>, %arg6: memref<32x128xbf16, #tpu.memory_space<vmem>>, %arg7: memref<32x128xbf16, #tpu.memory_space<vmem>>) attributes {dimension_semantics = [#tpu.dimension_semantics<parallel>], iteration_bounds = array<i64: 1>, scalar_prefetch = 0 : i64, scratch_operands = 0 : i64, tpu.core_type = #tpu.core_type<tc>, window_params = [{transform_indices = @transform_0, window_bounds = array<i64: 32, 72>}, {pipeline_mode = #tpu.pipeline_mode<synchronous>, transform_indices = @transform_1, window_bounds = array<i64: 72, 128>}, {pipeline_mode = #tpu.pipeline_mode<synchronous>, transform_indices = @transform_2, window_bounds = array<i64: 1, 128>}, {pipeline_mode = #tpu.pipeline_mode<synchronous>, transform_indices = @transform_3, window_bounds = array<i64: 128, 128>}, {pipeline_mode = #tpu.pipeline_mode<synchronous>, transform_indices = @transform_4, window_bounds = array<i64: 1, 128>}, {transform_indices = @transform_5, window_bounds = array<i64: 32, 128>}, {transform_indices = @transform_6, window_bounds = array<i64: 32, 128>}]} {
    %c0 = arith.constant 0 : index
    %c0_0 = arith.constant 0 : index
    %0 = vector.load %arg1[%c0, %c0_0] : memref<32x72xbf16, #tpu.memory_space<vmem>>, vector<32x72xbf16>
    %cst = arith.constant 0.000000e+00 : bf16
    %1 = vector.broadcast %cst : bf16 to vector<32x72xbf16>
    %2 = arith.maximumf %0, %1 : vector<32x72xbf16>
    %c0_1 = arith.constant 0 : index
    %c0_2 = arith.constant 0 : index
    %3 = vector.load %arg2[%c0_1, %c0_2] : memref<72x128xbf16, #tpu.memory_space<vmem>>, vector<72x128xbf16>
    %cst_3 = arith.constant dense<0.000000e+00> : vector<32x128xf32>
    %4 = tpu.matmul %2, %3, %cst_3 {dimension_numbers = #tpu.dot_dimension_numbers<[1], [0], [0], [1], [0, 0, 1, 1], [], []>} : vector<32x72xbf16>, vector<72x128xbf16>, vector<32x128xf32> -> vector<32x128xf32>
    %c0_4 = arith.constant 0 : index
    %c0_5 = arith.constant 0 : index
    %5 = vector.load %arg3[%c0_4, %c0_5] : memref<1x128xf32, #tpu.memory_space<vmem>>, vector<1x128xf32>
    %6 = vector.broadcast %5 : vector<1x128xf32> to vector<32x128xf32>
    %7 = arith.addf %4, %6 : vector<32x128xf32>
    %cst_6 = arith.constant 0.000000e+00 : f32
    %8 = vector.broadcast %cst_6 : f32 to vector<32x128xf32>
    %9 = arith.maximumf %7, %8 : vector<32x128xf32>
    %10 = arith.truncf %9 : vector<32x128xf32> to vector<32x128xbf16>
    %c0_7 = arith.constant 0 : index
    %c0_8 = arith.constant 0 : index
    %11 = vector.load %arg4[%c0_7, %c0_8] : memref<128x128xbf16, #tpu.memory_space<vmem>>, vector<128x128xbf16>
    %cst_9 = arith.constant dense<0.000000e+00> : vector<32x128xf32>
    %12 = tpu.matmul %10, %11, %cst_9 {dimension_numbers = #tpu.dot_dimension_numbers<[1], [0], [0], [1], [0, 0, 1, 1], [], []>} : vector<32x128xbf16>, vector<128x128xbf16>, vector<32x128xf32> -> vector<32x128xf32>
    %c0_10 = arith.constant 0 : index
    %c0_11 = arith.constant 0 : index
    %13 = vector.load %arg5[%c0_10, %c0_11] : memref<1x128xf32, #tpu.memory_space<vmem>>, vector<1x128xf32>
    %14 = vector.broadcast %13 : vector<1x128xf32> to vector<32x128xf32>
    %15 = arith.addf %12, %14 : vector<32x128xf32>
    %c0_12 = arith.constant 0 : index
    %c0_13 = arith.constant 0 : index
    %16 = vector.load %arg6[%c0_12, %c0_13] : memref<32x128xbf16, #tpu.memory_space<vmem>>, vector<32x128xbf16>
    %17 = arith.extf %16 : vector<32x128xbf16> to vector<32x128xf32>
    %18 = arith.addf %15, %17 : vector<32x128xf32>
    %19 = arith.truncf %18 : vector<32x128xf32> to vector<32x128xbf16>
    %c0_14 = arith.constant 0 : index
    %c0_15 = arith.constant 0 : index
    %20 = vector.load %arg7[%c0_14, %c0_15] : memref<32x128xbf16, #tpu.memory_space<vmem>>, vector<32x128xbf16>
    tpu.vector_store %arg7[%c0_14, %c0_15], %19 {strides = array<i32>} : memref<32x128xbf16, #tpu.memory_space<vmem>>, vector<32x128xbf16>,
    return
  }
  func.func @transform_0(%arg0: i32) -> (i32, i32) {
    %c0_i32 = arith.constant 0 : i32
    %c0_i32_0 = arith.constant 0 : i32
    return %arg0, %c0_i32 : i32, i32
  }
  func.func @transform_1(%arg0: i32) -> (i32, i32) {
    %c0_i32 = arith.constant 0 : i32
    %c0_i32_0 = arith.constant 0 : i32
    %c0_i32_1 = arith.constant 0 : i32
    return %c0_i32, %c0_i32_0 : i32, i32
  }
  func.func @transform_2(%arg0: i32) -> (i32, i32) {
    %c0_i32 = arith.constant 0 : i32
    %c0_i32_0 = arith.constant 0 : i32
    %c0_i32_1 = arith.constant 0 : i32
    return %c0_i32, %c0_i32_0 : i32, i32
  }
  func.func @transform_3(%arg0: i32) -> (i32, i32) {
    %c0_i32 = arith.constant 0 : i32
    %c0_i32_0 = arith.constant 0 : i32
    %c0_i32_1 = arith.constant 0 : i32
    return %c0_i32, %c0_i32_0 : i32, i32
  }
  func.func @transform_4(%arg0: i32) -> (i32, i32) {
    %c0_i32 = arith.constant 0 : i32
    %c0_i32_0 = arith.constant 0 : i32
    %c0_i32_1 = arith.constant 0 : i32
    return %c0_i32, %c0_i32_0 : i32, i32
  }
  func.func @transform_5(%arg0: i32) -> (i32, i32) {
    %c0_i32 = arith.constant 0 : i32
    %c0_i32_0 = arith.constant 0 : i32
    return %arg0, %c0_i32 : i32, i32
  }
  func.func @transform_6(%arg0: i32) -> (i32, i32) {
    %c0_i32 = arith.constant 0 : i32
    %c0_i32_0 = arith.constant 0 : i32
    return %arg0, %c0_i32 : i32, i32
  }
}

module attributes {stable_mosaic.version = 11 : i64} {
  func.func @_prevq_vq_kernel(%arg0: i32, %arg1: memref<8x128xbf16, #tpu.memory_space<vmem>>, %arg2: memref<128x128xbf16, #tpu.memory_space<vmem>>, %arg3: memref<1x128xf32, #tpu.memory_space<vmem>>, %arg4: memref<128x128xf32, #tpu.memory_space<vmem>>, %arg5: memref<1x128xf32, #tpu.memory_space<vmem>>, %arg6: memref<8x128xbf16, #tpu.memory_space<vmem>>, %arg7: memref<1x1xf32, #tpu.memory_space<vmem>>, %arg8: memref<1x1xf32, #tpu.memory_space<vmem>>, %arg9: memref<1x128xf32, #tpu.memory_space<vmem>>) attributes {dimension_semantics = [#tpu.dimension_semantics<arbitrary>], iteration_bounds = array<i64: 1>, scalar_prefetch = 0 : i64, scratch_operands = 1 : i64, tpu.core_type = #tpu.core_type<tc>, window_params = [{transform_indices = @transform_0, window_bounds = array<i64: 8, 128>}, {pipeline_mode = #tpu.pipeline_mode<synchronous>, transform_indices = @transform_1, window_bounds = array<i64: 128, 128>}, {pipeline_mode = #tpu.pipeline_mode<synchronous>, transform_indices = @transform_2, window_bounds = array<i64: 1, 128>}, {pipeline_mode = #tpu.pipeline_mode<synchronous>, transform_indices = @transform_3, window_bounds = array<i64: 128, 128>}, {pipeline_mode = #tpu.pipeline_mode<synchronous>, transform_indices = @transform_4, window_bounds = array<i64: 1, 128>}, {transform_indices = @transform_5, window_bounds = array<i64: 8, 128>}, {pipeline_mode = #tpu.pipeline_mode<synchronous>, transform_indices = @transform_6, window_bounds = array<i64: 1, 1>}, {pipeline_mode = #tpu.pipeline_mode<synchronous>, transform_indices = @transform_7, window_bounds = array<i64: 1, 1>}]} {
    %c0_i32 = arith.constant 0 : i32
    %0 = arith.cmpi eq, %arg0, %c0_i32 : i32
    %1 = arith.extui %0 : i1 to i32
    %c0_i32_0 = arith.constant 0 : i32
    %2 = arith.cmpi ne, %1, %c0_i32_0 : i32
    scf.if %2 {
      %cst_32 = arith.constant 0.000000e+00 : f32
      %73 = vector.broadcast %cst_32 : f32 to vector<1x128xf32>
      %c0_33 = arith.constant 0 : index
      %c0_34 = arith.constant 0 : index
      %74 = vector.load %arg9[%c0_33, %c0_34] : memref<1x128xf32, #tpu.memory_space<vmem>>, vector<1x128xf32>
      tpu.vector_store %arg9[%c0_33, %c0_34], %73 {strides = array<i32>} : memref<1x128xf32, #tpu.memory_space<vmem>>, vector<1x128xf32>,
      %cst_35 = arith.constant 0.000000e+00 : f32
      %75 = vector.broadcast %cst_35 : f32 to vector<1x1xf32>
      %c0_36 = arith.constant 0 : index
      %c0_37 = arith.constant 0 : index
      %76 = vector.load %arg7[%c0_36, %c0_37] : memref<1x1xf32, #tpu.memory_space<vmem>>, vector<1x1xf32>
      tpu.vector_store %arg7[%c0_36, %c0_37], %75 {strides = array<i32>} : memref<1x1xf32, #tpu.memory_space<vmem>>, vector<1x1xf32>,
    } else {
    }
    %c0 = arith.constant 0 : index
    %c0_1 = arith.constant 0 : index
    %3 = vector.load %arg1[%c0, %c0_1] : memref<8x128xbf16, #tpu.memory_space<vmem>>, vector<8x128xbf16>
    %cst = arith.constant 0.000000e+00 : bf16
    %4 = vector.broadcast %cst : bf16 to vector<8x128xbf16>
    %5 = arith.maximumf %3, %4 : vector<8x128xbf16>
    %c0_2 = arith.constant 0 : index
    %c0_3 = arith.constant 0 : index
    %6 = vector.load %arg2[%c0_2, %c0_3] : memref<128x128xbf16, #tpu.memory_space<vmem>>, vector<128x128xbf16>
    %cst_4 = arith.constant dense<0.000000e+00> : vector<8x128xf32>
    %7 = tpu.matmul %5, %6, %cst_4 {dimension_numbers = #tpu.dot_dimension_numbers<[1], [0], [0], [1], [0, 0, 1, 1], [], []>} : vector<8x128xbf16>, vector<128x128xbf16>, vector<8x128xf32> -> vector<8x128xf32>
    %c0_5 = arith.constant 0 : index
    %c0_6 = arith.constant 0 : index
    %8 = vector.load %arg3[%c0_5, %c0_6] : memref<1x128xf32, #tpu.memory_space<vmem>>, vector<1x128xf32>
    %9 = vector.broadcast %8 : vector<1x128xf32> to vector<8x128xf32>
    %10 = arith.addf %7, %9 : vector<8x128xf32>
    %c0_7 = arith.constant 0 : index
    %c0_8 = arith.constant 0 : index
    %11 = vector.load %arg4[%c0_7, %c0_8] : memref<128x128xf32, #tpu.memory_space<vmem>>, vector<128x128xf32>
    %12 = arith.mulf %10, %10 : vector<8x128xf32>
    %cst_9 = arith.constant dense<0.000000e+00> : vector<8xf32>
    %13 = vector.multi_reduction <add>, %12, %cst_9 [1] : vector<8x128xf32> to vector<8xf32>
    %14 = vector.shape_cast %13 : vector<8xf32> to vector<8x1xf32>
    %cst_10 = arith.constant dense<0.000000e+00> : vector<8x128xf32>
    %15 = tpu.matmul %10, %11, %cst_10 {dimension_numbers = #tpu.dot_dimension_numbers<[1], [1], [0], [0], [0, 0, 1, 0], [], []>} : vector<8x128xf32>, vector<128x128xf32>, vector<8x128xf32> -> vector<8x128xf32>
    %c0_11 = arith.constant 0 : index
    %c0_12 = arith.constant 0 : index
    %16 = vector.load %arg5[%c0_11, %c0_12] : memref<1x128xf32, #tpu.memory_space<vmem>>, vector<1x128xf32>
    %17 = vector.broadcast %14 : vector<8x1xf32> to vector<8x128xf32>
    %18 = vector.broadcast %16 : vector<1x128xf32> to vector<8x128xf32>
    %19 = arith.addf %17, %18 : vector<8x128xf32>
    %cst_13 = arith.constant 2.000000e+00 : f32
    %20 = vector.broadcast %cst_13 : f32 to vector<8x128xf32>
    %21 = arith.mulf %20, %15 : vector<8x128xf32>
    %22 = arith.subf %19, %21 : vector<8x128xf32>
    %23 = tpu.iota {dimensions = array<i32: 1>} : vector<8x128xi32>
    %c16_i32 = arith.constant 16 : i32
    %24 = vector.broadcast %c16_i32 : i32 to vector<8x128xi32>
    %25 = arith.cmpi slt, %23, %24 : vector<8x128xi32>
    %cst_14 = arith.constant 3.000000e+38 : f32
    %26 = vector.broadcast %cst_14 : f32 to vector<8x128xf32>
    %27 = arith.select %25, %22, %26 : vector<8x128xi1>, vector<8x128xf32>
    %cst_15 = arith.constant dense<0x7F800000> : vector<8xf32>
    %28 = vector.multi_reduction <minimumf>, %27, %cst_15 [1] : vector<8x128xf32> to vector<8xf32>
    %29 = vector.shape_cast %28 : vector<8xf32> to vector<8x1xf32>
    %30 = vector.broadcast %29 : vector<8x1xf32> to vector<8x128xf32>
    %31 = arith.cmpf ole, %27, %30 : vector<8x128xf32>
    %c128_i32 = arith.constant 128 : i32
    %32 = vector.broadcast %c128_i32 : i32 to vector<8x128xi32>
    %33 = arith.select %31, %23, %32 : vector<8x128xi1>, vector<8x128xi32>
    %cst_16 = arith.constant dense<2147483647> : vector<8xi32>
    %34 = vector.multi_reduction <minsi>, %33, %cst_16 [1] : vector<8x128xi32> to vector<8xi32>
    %35 = vector.shape_cast %34 : vector<8xi32> to vector<8x1xi32>
    %36 = vector.broadcast %35 : vector<8x1xi32> to vector<8x128xi32>
    %37 = arith.cmpi eq, %23, %36 : vector<8x128xi32>
    %38 = arith.extui %37 : vector<8x128xi1> to vector<8x128xi32>
    %39 = arith.sitofp %38 : vector<8x128xi32> to vector<8x128xf32>
    %cst_17 = arith.constant dense<0.000000e+00> : vector<8x128xf32>
    %40 = tpu.matmul %39, %11, %cst_17 {dimension_numbers = #tpu.dot_dimension_numbers<[1], [0], [0], [1], [0, 0, 1, 1], [], []>} : vector<8x128xf32>, vector<128x128xf32>, vector<8x128xf32> -> vector<8x128xf32>
    %41 = arith.truncf %40 : vector<8x128xf32> to vector<8x128xbf16>
    %c0_18 = arith.constant 0 : index
    %c0_19 = arith.constant 0 : index
    %42 = vector.load %arg6[%c0_18, %c0_19] : memref<8x128xbf16, #tpu.memory_space<vmem>>, vector<8x128xbf16>
    tpu.vector_store %arg6[%c0_18, %c0_19], %41 {strides = array<i32>} : memref<8x128xbf16, #tpu.memory_space<vmem>>, vector<8x128xbf16>,
    %c8_i32 = arith.constant 8 : i32
    %43 = arith.muli %arg0, %c8_i32 : i32
    %44 = tpu.iota {dimensions = array<i32: 0>} : vector<8x1xi32>
    %45 = vector.broadcast %43 : i32 to vector<8x1xi32>
    %46 = arith.addi %45, %44 : vector<8x1xi32>
    %c2_i32 = arith.constant 2 : i32
    %47 = vector.broadcast %c2_i32 : i32 to vector<8x1xi32>
    %48 = arith.cmpi slt, %46, %47 : vector<8x1xi32>
    %49 = arith.extui %48 : vector<8x1xi1> to vector<8x1xi32>
    %50 = arith.sitofp %49 : vector<8x1xi32> to vector<8x1xf32>
    %c0_20 = arith.constant 0 : index
    %c0_21 = arith.constant 0 : index
    %51 = vector.load %arg9[%c0_20, %c0_21] : memref<1x128xf32, #tpu.memory_space<vmem>>, vector<1x128xf32>
    %52 = vector.broadcast %50 : vector<8x1xf32> to vector<8x128xf32>
    %53 = arith.mulf %39, %52 : vector<8x128xf32>
    %cst_22 = arith.constant dense<0.000000e+00> : vector<128xf32>
    %54 = vector.multi_reduction <add>, %53, %cst_22 [0] : vector<8x128xf32> to vector<128xf32>
    %55 = vector.shape_cast %54 : vector<128xf32> to vector<1x128xf32>
    %56 = arith.addf %51, %55 : vector<1x128xf32>
    %c0_23 = arith.constant 0 : index
    %c0_24 = arith.constant 0 : index
    %57 = vector.load %arg9[%c0_23, %c0_24] : memref<1x128xf32, #tpu.memory_space<vmem>>, vector<1x128xf32>
    tpu.vector_store %arg9[%c0_23, %c0_24], %56 {strides = array<i32>} : memref<1x128xf32, #tpu.memory_space<vmem>>, vector<1x128xf32>,
    %58 = arith.subf %40, %10 : vector<8x128xf32>
    %59 = vector.broadcast %50 : vector<8x1xf32> to vector<8x128xf32>
    %60 = arith.mulf %58, %59 : vector<8x128xf32>
    %c0_25 = arith.constant 0 : index
    %c0_26 = arith.constant 0 : index
    %61 = vector.load %arg7[%c0_25, %c0_26] : memref<1x1xf32, #tpu.memory_space<vmem>>, vector<1x1xf32>
    %62 = arith.mulf %60, %60 : vector<8x128xf32>
    %63 = vector.shape_cast %62 : vector<8x128xf32> to vector<1x8x128xf32>
    %cst_27 = arith.constant dense<0.000000e+00> : vector<1xf32>
    %64 = vector.multi_reduction <add>, %63, %cst_27 [1, 2] : vector<1x8x128xf32> to vector<1xf32>
    %65 = vector.shape_cast %64 : vector<1xf32> to vector<1x1x1xf32>
    %66 = vector.extract %65[0, 0, 0] : f32 from vector<1x1x1xf32>
    %67 = vector.broadcast %66 : f32 to vector<1x1xf32>
    %68 = arith.addf %61, %67 : vector<1x1xf32>
    %c0_28 = arith.constant 0 : index
    %c0_29 = arith.constant 0 : index
    %69 = vector.load %arg7[%c0_28, %c0_29] : memref<1x1xf32, #tpu.memory_space<vmem>>, vector<1x1xf32>
    tpu.vector_store %arg7[%c0_28, %c0_29], %68 {strides = array<i32>} : memref<1x1xf32, #tpu.memory_space<vmem>>, vector<1x1xf32>,
    %c0_i32_30 = arith.constant 0 : i32
    %70 = arith.cmpi eq, %arg0, %c0_i32_30 : i32
    %71 = arith.extui %70 : i1 to i32
    %c0_i32_31 = arith.constant 0 : i32
    %72 = arith.cmpi ne, %71, %c0_i32_31 : i32
    scf.if %72 {
      %c0_32 = arith.constant 0 : index
      %c0_33 = arith.constant 0 : index
      %73 = vector.load %arg7[%c0_32, %c0_33] : memref<1x1xf32, #tpu.memory_space<vmem>>, vector<1x1xf32>
      %cst_34 = arith.constant 3.906250e-03 : f32
      %74 = vector.broadcast %cst_34 : f32 to vector<1x1xf32>
      %75 = arith.mulf %73, %74 : vector<1x1xf32>
      %c0_35 = arith.constant 0 : index
      %c0_36 = arith.constant 0 : index
      %76 = vector.load %arg7[%c0_35, %c0_36] : memref<1x1xf32, #tpu.memory_space<vmem>>, vector<1x1xf32>
      tpu.vector_store %arg7[%c0_35, %c0_36], %75 {strides = array<i32>} : memref<1x1xf32, #tpu.memory_space<vmem>>, vector<1x1xf32>,
      %c0_37 = arith.constant 0 : index
      %c0_38 = arith.constant 0 : index
      %77 = vector.load %arg9[%c0_37, %c0_38] : memref<1x128xf32, #tpu.memory_space<vmem>>, vector<1x128xf32>
      %cst_39 = arith.constant 5.000000e-01 : f32
      %78 = vector.broadcast %cst_39 : f32 to vector<1x128xf32>
      %79 = arith.mulf %77, %78 : vector<1x128xf32>
      %cst_40 = arith.constant 1.000000e-10 : f32
      %80 = vector.broadcast %cst_40 : f32 to vector<1x128xf32>
      %81 = arith.addf %79, %80 : vector<1x128xf32>
      %82 = math.log %81 : vector<1x128xf32>
      %83 = arith.mulf %79, %82 : vector<1x128xf32>
      %84 = vector.shape_cast %83 : vector<1x128xf32> to vector<1x1x128xf32>
      %cst_41 = arith.constant dense<0.000000e+00> : vector<1xf32>
      %85 = vector.multi_reduction <add>, %84, %cst_41 [1, 2] : vector<1x1x128xf32> to vector<1xf32>
      %86 = vector.shape_cast %85 : vector<1xf32> to vector<1x1x1xf32>
      %87 = vector.extract %86[0, 0, 0] : f32 from vector<1x1x1xf32>
      %cst_42 = arith.constant 0.000000e+00 : f32
      %88 = arith.subf %cst_42, %87 : f32
      %89 = math.exp %88 : f32
      %90 = vector.broadcast %89 : f32 to vector<1x1xf32>
      %c0_43 = arith.constant 0 : index
      %c0_44 = arith.constant 0 : index
      %91 = vector.load %arg8[%c0_43, %c0_44] : memref<1x1xf32, #tpu.memory_space<vmem>>, vector<1x1xf32>
      tpu.vector_store %arg8[%c0_43, %c0_44], %90 {strides = array<i32>} : memref<1x1xf32, #tpu.memory_space<vmem>>, vector<1x1xf32>,
    } else {
    }
    return
  }
  func.func @transform_0(%arg0: i32) -> (i32, i32) {
    %c0_i32 = arith.constant 0 : i32
    %c0_i32_0 = arith.constant 0 : i32
    return %arg0, %c0_i32 : i32, i32
  }
  func.func @transform_1(%arg0: i32) -> (i32, i32) {
    %c0_i32 = arith.constant 0 : i32
    %c0_i32_0 = arith.constant 0 : i32
    %c0_i32_1 = arith.constant 0 : i32
    return %c0_i32, %c0_i32_0 : i32, i32
  }
  func.func @transform_2(%arg0: i32) -> (i32, i32) {
    %c0_i32 = arith.constant 0 : i32
    %c0_i32_0 = arith.constant 0 : i32
    %c0_i32_1 = arith.constant 0 : i32
    return %c0_i32, %c0_i32_0 : i32, i32
  }
  func.func @transform_3(%arg0: i32) -> (i32, i32) {
    %c0_i32 = arith.constant 0 : i32
    %c0_i32_0 = arith.constant 0 : i32
    %c0_i32_1 = arith.constant 0 : i32
    return %c0_i32, %c0_i32_0 : i32, i32
  }
  func.func @transform_4(%arg0: i32) -> (i32, i32) {
    %c0_i32 = arith.constant 0 : i32
    %c0_i32_0 = arith.constant 0 : i32
    %c0_i32_1 = arith.constant 0 : i32
    return %c0_i32, %c0_i32_0 : i32, i32
  }
  func.func @transform_5(%arg0: i32) -> (i32, i32) {
    %c0_i32 = arith.constant 0 : i32
    %c0_i32_0 = arith.constant 0 : i32
    return %arg0, %c0_i32 : i32, i32
  }
  func.func @transform_6(%arg0: i32) -> (i32, i32) {
    %c0_i32 = arith.constant 0 : i32
    %c0_i32_0 = arith.constant 0 : i32
    %c0_i32_1 = arith.constant 0 : i32
    return %c0_i32, %c0_i32_0 : i32, i32
  }
  func.func @transform_7(%arg0: i32) -> (i32, i32) {
    %c0_i32 = arith.constant 0 : i32
    %c0_i32_0 = arith.constant 0 : i32
    %c0_i32_1 = arith.constant 0 : i32
    return %c0_i32, %c0_i32_0 : i32, i32
  }
}

module attributes {stable_mosaic.version = 11 : i64} {
  func.func @_mm_kernel_1k(%arg0: i32, %arg1: i32, %arg2: memref<32x72xbf16, #tpu.memory_space<vmem>>, %arg3: memref<72x128xbf16, #tpu.memory_space<vmem>>, %arg4: memref<1x128xf32, #tpu.memory_space<vmem>>, %arg5: memref<32x128xbf16, #tpu.memory_space<vmem>>) attributes {dimension_semantics = [#tpu.dimension_semantics<parallel>, #tpu.dimension_semantics<parallel>], iteration_bounds = array<i64: 1, 1>, scalar_prefetch = 0 : i64, scratch_operands = 0 : i64, tpu.core_type = #tpu.core_type<tc>, window_params = [{transform_indices = @transform_0, window_bounds = array<i64: 32, 72>}, {transform_indices = @transform_1, window_bounds = array<i64: 72, 128>}, {transform_indices = @transform_2, window_bounds = array<i64: 1, 128>}, {transform_indices = @transform_3, window_bounds = array<i64: 32, 128>}]} {
    %c0 = arith.constant 0 : index
    %c0_0 = arith.constant 0 : index
    %0 = vector.load %arg2[%c0, %c0_0] : memref<32x72xbf16, #tpu.memory_space<vmem>>, vector<32x72xbf16>
    %cst = arith.constant 0.000000e+00 : bf16
    %1 = vector.broadcast %cst : bf16 to vector<32x72xbf16>
    %2 = arith.maximumf %0, %1 : vector<32x72xbf16>
    %c0_1 = arith.constant 0 : index
    %c0_2 = arith.constant 0 : index
    %3 = vector.load %arg3[%c0_1, %c0_2] : memref<72x128xbf16, #tpu.memory_space<vmem>>, vector<72x128xbf16>
    %cst_3 = arith.constant dense<0.000000e+00> : vector<32x128xf32>
    %4 = tpu.matmul %2, %3, %cst_3 {dimension_numbers = #tpu.dot_dimension_numbers<[1], [0], [0], [1], [0, 0, 1, 1], [], []>} : vector<32x72xbf16>, vector<72x128xbf16>, vector<32x128xf32> -> vector<32x128xf32>
    %c0_4 = arith.constant 0 : index
    %c0_5 = arith.constant 0 : index
    %5 = vector.load %arg4[%c0_4, %c0_5] : memref<1x128xf32, #tpu.memory_space<vmem>>, vector<1x128xf32>
    %6 = vector.broadcast %5 : vector<1x128xf32> to vector<32x128xf32>
    %7 = arith.addf %4, %6 : vector<32x128xf32>
    %cst_6 = arith.constant 0.000000e+00 : f32
    %8 = vector.broadcast %cst_6 : f32 to vector<32x128xf32>
    %9 = arith.maximumf %7, %8 : vector<32x128xf32>
    %10 = arith.truncf %9 : vector<32x128xf32> to vector<32x128xbf16>
    %c0_7 = arith.constant 0 : index
    %c0_8 = arith.constant 0 : index
    %11 = vector.load %arg5[%c0_7, %c0_8] : memref<32x128xbf16, #tpu.memory_space<vmem>>, vector<32x128xbf16>
    tpu.vector_store %arg5[%c0_7, %c0_8], %10 {strides = array<i32>} : memref<32x128xbf16, #tpu.memory_space<vmem>>, vector<32x128xbf16>,
    return
  }
  func.func @transform_0(%arg0: i32, %arg1: i32) -> (i32, i32) {
    %c0_i32 = arith.constant 0 : i32
    %c0_i32_0 = arith.constant 0 : i32
    return %arg0, %c0_i32 : i32, i32
  }
  func.func @transform_1(%arg0: i32, %arg1: i32) -> (i32, i32) {
    %c0_i32 = arith.constant 0 : i32
    %c0_i32_0 = arith.constant 0 : i32
    return %c0_i32, %arg1 : i32, i32
  }
  func.func @transform_2(%arg0: i32, %arg1: i32) -> (i32, i32) {
    %c0_i32 = arith.constant 0 : i32
    %c0_i32_0 = arith.constant 0 : i32
    return %c0_i32, %arg1 : i32, i32
  }
  func.func @transform_3(%arg0: i32, %arg1: i32) -> (i32, i32) {
    %c0_i32 = arith.constant 0 : i32
    return %arg0, %arg1 : i32, i32
  }
}

module attributes {stable_mosaic.version = 11 : i64} {
  func.func @_mm_kernel_1k(%arg0: i32, %arg1: i32, %arg2: memref<32x18xbf16, #tpu.memory_space<vmem>>, %arg3: memref<18x128xbf16, #tpu.memory_space<vmem>>, %arg4: memref<1x128xf32, #tpu.memory_space<vmem>>, %arg5: memref<32x128xbf16, #tpu.memory_space<vmem>>) attributes {dimension_semantics = [#tpu.dimension_semantics<parallel>, #tpu.dimension_semantics<parallel>], iteration_bounds = array<i64: 1, 1>, scalar_prefetch = 0 : i64, scratch_operands = 0 : i64, tpu.core_type = #tpu.core_type<tc>, window_params = [{transform_indices = @transform_0, window_bounds = array<i64: 32, 18>}, {transform_indices = @transform_1, window_bounds = array<i64: 18, 128>}, {transform_indices = @transform_2, window_bounds = array<i64: 1, 128>}, {transform_indices = @transform_3, window_bounds = array<i64: 32, 128>}]} {
    %c0 = arith.constant 0 : index
    %c0_0 = arith.constant 0 : index
    %0 = vector.load %arg2[%c0, %c0_0] : memref<32x18xbf16, #tpu.memory_space<vmem>>, vector<32x18xbf16>
    %c0_1 = arith.constant 0 : index
    %c0_2 = arith.constant 0 : index
    %1 = vector.load %arg3[%c0_1, %c0_2] : memref<18x128xbf16, #tpu.memory_space<vmem>>, vector<18x128xbf16>
    %cst = arith.constant dense<0.000000e+00> : vector<32x128xf32>
    %2 = tpu.matmul %0, %1, %cst {dimension_numbers = #tpu.dot_dimension_numbers<[1], [0], [0], [1], [0, 0, 1, 1], [], []>} : vector<32x18xbf16>, vector<18x128xbf16>, vector<32x128xf32> -> vector<32x128xf32>
    %c0_3 = arith.constant 0 : index
    %c0_4 = arith.constant 0 : index
    %3 = vector.load %arg4[%c0_3, %c0_4] : memref<1x128xf32, #tpu.memory_space<vmem>>, vector<1x128xf32>
    %4 = vector.broadcast %3 : vector<1x128xf32> to vector<32x128xf32>
    %5 = arith.addf %2, %4 : vector<32x128xf32>
    %6 = arith.truncf %5 : vector<32x128xf32> to vector<32x128xbf16>
    %c0_5 = arith.constant 0 : index
    %c0_6 = arith.constant 0 : index
    %7 = vector.load %arg5[%c0_5, %c0_6] : memref<32x128xbf16, #tpu.memory_space<vmem>>, vector<32x128xbf16>
    tpu.vector_store %arg5[%c0_5, %c0_6], %6 {strides = array<i32>} : memref<32x128xbf16, #tpu.memory_space<vmem>>, vector<32x128xbf16>,
    return
  }
  func.func @transform_0(%arg0: i32, %arg1: i32) -> (i32, i32) {
    %c0_i32 = arith.constant 0 : i32
    %c0_i32_0 = arith.constant 0 : i32
    return %arg0, %c0_i32 : i32, i32
  }
  func.func @transform_1(%arg0: i32, %arg1: i32) -> (i32, i32) {
    %c0_i32 = arith.constant 0 : i32
    %c0_i32_0 = arith.constant 0 : i32
    return %c0_i32, %arg1 : i32, i32
  }
  func.func @transform_2(%arg0: i32, %arg1: i32) -> (i32, i32) {
    %c0_i32 = arith.constant 0 : i32
    %c0_i32_0 = arith.constant 0 : i32
    return %c0_i32, %arg1 : i32, i32
  }
  func.func @transform_3(%arg0: i32, %arg1: i32) -> (i32, i32) {
    %c0_i32 = arith.constant 0 : i32
    return %arg0, %arg1 : i32, i32
  }
}

module attributes {stable_mosaic.version = 11 : i64} {
  func.func @_mm_kernel_1k(%arg0: i32, %arg1: i32, %arg2: memref<128x36xbf16, #tpu.memory_space<vmem>>, %arg3: memref<36x128xbf16, #tpu.memory_space<vmem>>, %arg4: memref<1x128xf32, #tpu.memory_space<vmem>>, %arg5: memref<128x128xf32, #tpu.memory_space<vmem>>) attributes {dimension_semantics = [#tpu.dimension_semantics<parallel>, #tpu.dimension_semantics<parallel>], iteration_bounds = array<i64: 1, 1>, scalar_prefetch = 0 : i64, scratch_operands = 0 : i64, tpu.core_type = #tpu.core_type<tc>, window_params = [{transform_indices = @transform_0, window_bounds = array<i64: 128, 36>}, {transform_indices = @transform_1, window_bounds = array<i64: 36, 128>}, {transform_indices = @transform_2, window_bounds = array<i64: 1, 128>}, {transform_indices = @transform_3, window_bounds = array<i64: 128, 128>}]} {
    %c0 = arith.constant 0 : index
    %c0_0 = arith.constant 0 : index
    %0 = vector.load %arg2[%c0, %c0_0] : memref<128x36xbf16, #tpu.memory_space<vmem>>, vector<128x36xbf16>
    %c0_1 = arith.constant 0 : index
    %c0_2 = arith.constant 0 : index
    %1 = vector.load %arg3[%c0_1, %c0_2] : memref<36x128xbf16, #tpu.memory_space<vmem>>, vector<36x128xbf16>
    %cst = arith.constant dense<0.000000e+00> : vector<128x128xf32>
    %2 = tpu.matmul %0, %1, %cst {dimension_numbers = #tpu.dot_dimension_numbers<[1], [0], [0], [1], [0, 0, 1, 1], [], []>} : vector<128x36xbf16>, vector<36x128xbf16>, vector<128x128xf32> -> vector<128x128xf32>
    %c0_3 = arith.constant 0 : index
    %c0_4 = arith.constant 0 : index
    %3 = vector.load %arg4[%c0_3, %c0_4] : memref<1x128xf32, #tpu.memory_space<vmem>>, vector<1x128xf32>
    %4 = vector.broadcast %3 : vector<1x128xf32> to vector<128x128xf32>
    %5 = arith.addf %2, %4 : vector<128x128xf32>
    %c0_5 = arith.constant 0 : index
    %c0_6 = arith.constant 0 : index
    %6 = vector.load %arg5[%c0_5, %c0_6] : memref<128x128xf32, #tpu.memory_space<vmem>>, vector<128x128xf32>
    tpu.vector_store %arg5[%c0_5, %c0_6], %5 {strides = array<i32>} : memref<128x128xf32, #tpu.memory_space<vmem>>, vector<128x128xf32>,
    return
  }
  func.func @transform_0(%arg0: i32, %arg1: i32) -> (i32, i32) {
    %c0_i32 = arith.constant 0 : i32
    %c0_i32_0 = arith.constant 0 : i32
    return %arg0, %c0_i32 : i32, i32
  }
  func.func @transform_1(%arg0: i32, %arg1: i32) -> (i32, i32) {
    %c0_i32 = arith.constant 0 : i32
    %c0_i32_0 = arith.constant 0 : i32
    return %c0_i32, %arg1 : i32, i32
  }
  func.func @transform_2(%arg0: i32, %arg1: i32) -> (i32, i32) {
    %c0_i32 = arith.constant 0 : i32
    %c0_i32_0 = arith.constant 0 : i32
    return %c0_i32, %arg1 : i32, i32
  }
  func.func @transform_3(%arg0: i32, %arg1: i32) -> (i32, i32) {
    %c0_i32 = arith.constant 0 : i32
    return %arg0, %arg1 : i32, i32
  }
}

</mosaic_0001>

<llo_original>
// kernel: model_sep_forward.9
$region0: #{model_sep_forward.9}
  #allocation0 [shape = 'u32[]', space=smem, size = 0x4, offset = 0x4, fixed_abs, tag = 'smem constant byte address 0x4 - core index']
  #allocation1 [shape = 'u32[72,128]{1,0:T(1,128)}', space=vmem, size = 0x9000, scoped, tag = 'internal scratch']
  %s0 = inlined_call_operand.vmem [shape: bf16[128,48], index: 0, kind: input, shape index: {}]
  %s1 = inlined_call_operand.vmem [shape: bf16[48,128], index: 1, kind: input, shape index: {}]
  %s2 = inlined_call_operand.vmem [shape: f32[1,128], index: 2, kind: input, shape index: {}]
  %s3 = inlined_call_operand.vmem [shape: bf16[128,128], index: 3, kind: output, shape index: {}]
  %s4 = sld [smem:[#allocation0]]
  $region22: #{model_sep_forward.9} parent=0
    _
  %s6 = ssub.s32 1, %s4
  %s7 = scalar_select 0, %s6, %s4
  // Predicated region
  $region2: #{model_sep_forward.9} parent=0 // pred_check
    _
  $region3: #{model_sep_forward.9} parent=0 // pred_check_branch
    %9 = sbr.rel (0) target = $region5
  $region4: #{model_sep_forward.9} parent=0 // pred_region
    _
  $region5: #{model_sep_forward.9} parent=0 // pred_fallthru
    _
  // Predicated region
  $region6: #{model_sep_forward.9} parent=0 // pred_check
    _
  $region7: #{model_sep_forward.9} parent=0 // pred_check_branch
    %11 = sbr.rel (0) target = $region9
  $region8: #{model_sep_forward.9} parent=0 // pred_region
    _
  $region9: #{model_sep_forward.9} parent=0 // pred_fallthru
    _
  // Predicated region
  $region10: #{model_sep_forward.9} parent=0 // pred_check
    _
  $region11: #{model_sep_forward.9} parent=0 // pred_check_branch
    %13 = sbr.rel (0) target = $region13
  $region12: #{model_sep_forward.9} parent=0 // pred_region
    _
  $region13: #{model_sep_forward.9} parent=0 // pred_fallthru
    _
  %v15 = vld [vmem:[%s0] sm:$0xf]
  %v16 = vld [vmem:[%s0 + $0x4] sm:$0xf]
  %v17 = vld [vmem:[%s0 + $0x8] sm:$0xf]
  %v18 = vld [vmem:[%s0 + $0xc] sm:$0xf]
  %v19 = vld [vmem:[%s0 + $0x10] sm:$0xf]
  %v20 = vld [vmem:[%s0 + $0x14] sm:$0xf]
  %v21 = vld [vmem:[%s0 + $0x18] sm:$0xf]
  %v22 = vld [vmem:[%s0 + $0x1c] sm:$0xf]
  %v23 = vld [vmem:[%s0 + $0x20] sm:$0xf]
  %v24 = vld [vmem:[%s0 + $0x24] sm:$0xf]
  %v25 = vld [vmem:[%s0 + $0x28] sm:$0xf]
  %v26 = vld [vmem:[%s0 + $0x2c] sm:$0xf]
  %v27 = vld [vmem:[%s0 + $0x30] sm:$0xf]
  %v28 = vld [vmem:[%s0 + $0x34] sm:$0xf]
  %v29 = vld [vmem:[%s0 + $0x38] sm:$0xf]
  %v30 = vld [vmem:[%s0 + $0x3c] sm:$0xf]
  %v31 = vld [vmem:[%s1] sm:$0xf]
  %v32 = vld [vmem:[%s1 + $0x4] sm:$0xf]
  %v33 = vld [vmem:[%s1 + $0x8] sm:$0xf]
  %v34 = vld [vmem:[%s1 + $0xc] sm:$0xf]
  %v35 = vld [vmem:[%s1 + $0x10] sm:$0xf]
  %v36 = vld [vmem:[%s1 + $0x14] sm:$0xf]
  %v37 = vld [vmem:[%s2] sm:$0x1]
  %v39 = vperm.slane %v37, 0
  %v57 = vunpack.c.l.b16 %v15
  %v58 = vunpack.c.l.b16 %v16
  %v59 = vunpack.c.l.b16 %v17
  %v60 = vunpack.c.l.b16 %v18
  %v61 = vunpack.c.l.b16 %v19
  %v62 = vunpack.c.l.b16 %v20
  %v63 = vunpack.c.l.b16 %v21
  %v64 = vunpack.c.l.b16 %v22
  %v65 = vunpack.c.l.b16 %v23
  %v66 = vunpack.c.l.b16 %v24
  %v67 = vunpack.c.l.b16 %v25
  %v68 = vunpack.c.l.b16 %v26
  %v69 = vunpack.c.l.b16 %v27
  %v70 = vunpack.c.l.b16 %v28
  %v71 = vunpack.c.l.b16 %v29
  %v72 = vunpack.c.l.b16 %v30
  %v73 = vpack.c.b16 %v58, %v57
  %v74 = vpack.c.b16 %v60, %v59
  %v75 = vpack.c.b16 %v62, %v61
  %v76 = vpack.c.b16 %v64, %v63
  %v77 = vpack.c.b16 %v66, %v65
  %v78 = vpack.c.b16 %v68, %v67
  %v79 = vpack.c.b16 %v70, %v69
  %v80 = vpack.c.b16 %v72, %v71
  %v87 = vunpack.c.l.b16 %v31
  %v88 = vunpack.c.l.b16 %v32
  %v89 = vunpack.c.l.b16 %v33
  %v90 = vunpack.c.l.b16 %v34
  %v91 = vunpack.c.l.b16 %v35
  %v92 = vunpack.c.l.b16 %v36
  %v93 = vpack.c.b16 %v88, %v87
  %v94 = vpack.c.b16 %v90, %v89
  %v95 = vpack.c.b16 %v92, %v91
  %vm99 = vcmask 392192
  %v101 = vsel %vm99, %v73, 0
  %v104 = vsel %vm99, %v74, 0
  %v107 = vsel %vm99, %v75, 0
  %v110 = vsel %vm99, %v76, 0
  %v113 = vsel %vm99, %v77, 0
  %v116 = vsel %vm99, %v78, 0
  %v119 = vsel %vm99, %v79, 0
  %v122 = vsel %vm99, %v80, 0
  %124 = vmatpush.bf16.msra.mxu0 0
  %125 = vmatpush.bf16.msra.mxu0 0
  %126 = vmatpush.bf16.msra.mxu0 0
  %127 = vmatpush.bf16.msra.mxu0 0
  %128 = vmatpush.bf16.msra.mxu0 0
  %129 = vmatpush.bf16.msra.mxu0 %v95
  %130 = vmatpush.bf16.msra.mxu0 %v94
  %131 = vmatpush.bf16.msra.mxu0 %v93
  %132 = vmatmul.bf16.gmra.mxu0 %v101
  %v133 = vpop.f32.mrf.mxu0
  %v134 = vadd.f32 %v39, %v133
  %v135 = vpop.f32.mrf.mxu0
  %v136 = vadd.f32 %v39, %v135
  %137 = vmatmul.bf16.gmra.mxu0 %v104
  %v138 = vpop.f32.mrf.mxu0
  %v139 = vadd.f32 %v39, %v138
  %v140 = vpop.f32.mrf.mxu0
  %v141 = vadd.f32 %v39, %v140
  %142 = vmatmul.bf16.gmra.mxu0 %v107
  %v143 = vpop.f32.mrf.mxu0
  %v144 = vadd.f32 %v39, %v143
  %v145 = vpop.f32.mrf.mxu0
  %v146 = vadd.f32 %v39, %v145
  %147 = vmatmul.bf16.gmra.mxu0 %v110
  %v148 = vpop.f32.mrf.mxu0
  %v149 = vadd.f32 %v39, %v148
  %v150 = vpop.f32.mrf.mxu0
  %v151 = vadd.f32 %v39, %v150
  %152 = vmatmul.bf16.gmra.mxu0 %v113
  %v153 = vpop.f32.mrf.mxu0
  %v154 = vadd.f32 %v39, %v153
  %v155 = vpop.f32.mrf.mxu0
  %v156 = vadd.f32 %v39, %v155
  %157 = vmatmul.bf16.gmra.mxu0 %v116
  %v158 = vpop.f32.mrf.mxu0
  %v159 = vadd.f32 %v39, %v158
  %v160 = vpop.f32.mrf.mxu0
  %v161 = vadd.f32 %v39, %v160
  %162 = vmatmul.bf16.gmra.mxu0 %v119
  %v163 = vpop.f32.mrf.mxu0
  %v164 = vadd.f32 %v39, %v163
  %v165 = vpop.f32.mrf.mxu0
  %v166 = vadd.f32 %v39, %v165
  %167 = vmatmul.bf16.gmra.mxu0 %v122
  %v168 = vpop.f32.mrf.mxu0
  %v169 = vadd.f32 %v39, %v168
  %v170 = vpop.f32.mrf.mxu0
  %v171 = vadd.f32 %v39, %v170
  %172 = vdwg.mxu0
  %v173 = vmax.f32 %v134, 0.0
  %v174 = vmax.f32 %v136, 0.0
  %v175 = vmax.f32 %v139, 0.0
  %v176 = vmax.f32 %v141, 0.0
  %v177 = vmax.f32 %v144, 0.0
  %v178 = vmax.f32 %v146, 0.0
  %v179 = vmax.f32 %v149, 0.0
  %v180 = vmax.f32 %v151, 0.0
  %v181 = vmax.f32 %v154, 0.0
  %v182 = vmax.f32 %v156, 0.0
  %v183 = vmax.f32 %v159, 0.0
  %v184 = vmax.f32 %v161, 0.0
  %v185 = vmax.f32 %v164, 0.0
  %v186 = vmax.f32 %v166, 0.0
  %v187 = vmax.f32 %v169, 0.0
  %v188 = vmax.f32 %v171, 0.0
  %v189 = vpack.c.bf16 %v173, %v173
  %v190 = vpack.c.bf16 %v174, %v174
  %v191 = vpack.c.bf16 %v175, %v175
  %v192 = vpack.c.bf16 %v176, %v176
  %v193 = vpack.c.bf16 %v177, %v177
  %v194 = vpack.c.bf16 %v178, %v178
  %v195 = vpack.c.bf16 %v179, %v179
  %v196 = vpack.c.bf16 %v180, %v180
  %v197 = vpack.c.bf16 %v181, %v181
  %v198 = vpack.c.bf16 %v182, %v182
  %v199 = vpack.c.bf16 %v183, %v183
  %v200 = vpack.c.bf16 %v184, %v184
  %v201 = vpack.c.bf16 %v185, %v185
  %v202 = vpack.c.bf16 %v186, %v186
  %v203 = vpack.c.bf16 %v187, %v187
  %v204 = vpack.c.bf16 %v188, %v188
  %205 = vst [vmem:[%s3] sm:$0xf] %v189
  %206 = vst [vmem:[%s3 + $0x4] sm:$0xf] %v190
  %207 = vst [vmem:[%s3 + $0x8] sm:$0xf] %v191
  %208 = vst [vmem:[%s3 + $0xc] sm:$0xf] %v192
  %209 = vst [vmem:[%s3 + $0x10] sm:$0xf] %v193
  %210 = vst [vmem:[%s3 + $0x14] sm:$0xf] %v194
  %211 = vst [vmem:[%s3 + $0x18] sm:$0xf] %v195
  %212 = vst [vmem:[%s3 + $0x1c] sm:$0xf] %v196
  %213 = vst [vmem:[%s3 + $0x20] sm:$0xf] %v197
  %214 = vst [vmem:[%s3 + $0x24] sm:$0xf] %v198
  %215 = vst [vmem:[%s3 + $0x28] sm:$0xf] %v199
  %216 = vst [vmem:[%s3 + $0x2c] sm:$0xf] %v200
  %217 = vst [vmem:[%s3 + $0x30] sm:$0xf] %v201
  %218 = vst [vmem:[%s3 + $0x34] sm:$0xf] %v202
  %219 = vst [vmem:[%s3 + $0x38] sm:$0xf] %v203
  %220 = vst [vmem:[%s3 + $0x3c] sm:$0xf] %v204
  // Predicated region
  $region14: #{model_sep_forward.9} parent=0 // pred_check
    _
  $region15: #{model_sep_forward.9} parent=0 // pred_check_branch
    %222 = sbr.rel (0) target = $region17
  $region16: #{model_sep_forward.9} parent=0 // pred_region
    _
  $region17: #{model_sep_forward.9} parent=0 // pred_fallthru
    _
  // Predicated region
  $region18: #{model_sep_forward.9} parent=0 // pred_check
    _
  $region19: #{model_sep_forward.9} parent=0 // pred_check_branch
    %224 = sbr.rel (0) target = $region21
  $region20: #{model_sep_forward.9} parent=0 // pred_region
    _
  $region21: #{model_sep_forward.9} parent=0 // pred_fallthru
    _

// kernel: model_sep_forward.10
$region0: #{model_sep_forward.10}
  #allocation0 [shape = 'u32[]', space=smem, size = 0x4, offset = 0x4, fixed_abs, tag = 'smem constant byte address 0x4 - core index']
  #allocation1 [shape = 'u32[72,128]{1,0:T(1,128)}', space=vmem, size = 0x9000, scoped, tag = 'internal scratch']
  %s0 = inlined_call_operand.vmem [shape: bf16[32,64], index: 0, kind: input, shape index: {}]
  %s1 = inlined_call_operand.vmem [shape: bf16[64,128], index: 1, kind: input, shape index: {}]
  %s2 = inlined_call_operand.vmem [shape: f32[1,128], index: 2, kind: input, shape index: {}]
  %s3 = inlined_call_operand.vmem [shape: bf16[32,128], index: 3, kind: output, shape index: {}]
  %s4 = sld [smem:[#allocation0]]
  $region22: #{model_sep_forward.10} parent=0
    _
  %s6 = ssub.s32 1, %s4
  %s7 = scalar_select 0, %s6, %s4
  // Predicated region
  $region2: #{model_sep_forward.10} parent=0 // pred_check
    _
  $region3: #{model_sep_forward.10} parent=0 // pred_check_branch
    %9 = sbr.rel (0) target = $region5
  $region4: #{model_sep_forward.10} parent=0 // pred_region
    _
  $region5: #{model_sep_forward.10} parent=0 // pred_fallthru
    _
  // Predicated region
  $region6: #{model_sep_forward.10} parent=0 // pred_check
    _
  $region7: #{model_sep_forward.10} parent=0 // pred_check_branch
    %11 = sbr.rel (0) target = $region9
  $region8: #{model_sep_forward.10} parent=0 // pred_region
    _
  $region9: #{model_sep_forward.10} parent=0 // pred_fallthru
    _
  // Predicated region
  $region10: #{model_sep_forward.10} parent=0 // pred_check
    _
  $region11: #{model_sep_forward.10} parent=0 // pred_check_branch
    %13 = sbr.rel (0) target = $region13
  $region12: #{model_sep_forward.10} parent=0 // pred_region
    _
  $region13: #{model_sep_forward.10} parent=0 // pred_fallthru
    _
  %v15 = vld [vmem:[%s0] sm:$0xf]
  %v16 = vld [vmem:[%s0 + $0x4] sm:$0xf]
  %v17 = vld [vmem:[%s0 + $0x8] sm:$0xf]
  %v18 = vld [vmem:[%s0 + $0xc] sm:$0xf]
  %v19 = vld [vmem:[%s1] sm:$0xf]
  %v20 = vld [vmem:[%s1 + $0x4] sm:$0xf]
  %v21 = vld [vmem:[%s1 + $0x8] sm:$0xf]
  %v22 = vld [vmem:[%s1 + $0xc] sm:$0xf]
  %v23 = vld [vmem:[%s1 + $0x10] sm:$0xf]
  %v24 = vld [vmem:[%s1 + $0x14] sm:$0xf]
  %v25 = vld [vmem:[%s1 + $0x18] sm:$0xf]
  %v26 = vld [vmem:[%s1 + $0x1c] sm:$0xf]
  %v27 = vld [vmem:[%s2] sm:$0x1]
  %v29 = vperm.slane %v27, 0
  %v35 = vunpack.c.l.b16 %v15
  %v36 = vunpack.c.l.b16 %v16
  %v37 = vunpack.c.l.b16 %v17
  %v38 = vunpack.c.l.b16 %v18
  %v39 = vpack.c.b16 %v36, %v35
  %v40 = vpack.c.b16 %v38, %v37
  %v49 = vunpack.c.l.b16 %v19
  %v50 = vunpack.c.l.b16 %v20
  %v51 = vunpack.c.l.b16 %v21
  %v52 = vunpack.c.l.b16 %v22
  %v53 = vunpack.c.l.b16 %v23
  %v54 = vunpack.c.l.b16 %v24
  %v55 = vunpack.c.l.b16 %v25
  %v56 = vunpack.c.l.b16 %v26
  %v57 = vpack.c.b16 %v50, %v49
  %v58 = vpack.c.b16 %v52, %v51
  %v59 = vpack.c.b16 %v54, %v53
  %v60 = vpack.c.b16 %v56, %v55
  %vm65 = vcmask 523264
  %v67 = vsel %vm65, %v39, 0
  %v70 = vsel %vm65, %v40, 0
  %72 = vmatpush.bf16.msra.mxu0 0
  %73 = vmatpush.bf16.msra.mxu0 0
  %74 = vmatpush.bf16.msra.mxu0 0
  %75 = vmatpush.bf16.msra.mxu0 0
  %76 = vmatpush.bf16.msra.mxu0 %v60
  %77 = vmatpush.bf16.msra.mxu0 %v59
  %78 = vmatpush.bf16.msra.mxu0 %v58
  %79 = vmatpush.bf16.msra.mxu0 %v57
  %80 = vmatmul.bf16.gmra.mxu0 %v67
  %v81 = vpop.f32.mrf.mxu0
  %v82 = vadd.f32 %v29, %v81
  %v83 = vpop.f32.mrf.mxu0
  %v84 = vadd.f32 %v29, %v83
  %85 = vmatmul.bf16.gmra.mxu0 %v70
  %v86 = vpop.f32.mrf.mxu0
  %v87 = vadd.f32 %v29, %v86
  %v88 = vpop.f32.mrf.mxu0
  %v89 = vadd.f32 %v29, %v88
  %90 = vdwg.mxu0
  %v91 = vmax.f32 %v82, 0.0
  %v92 = vmax.f32 %v84, 0.0
  %v93 = vmax.f32 %v87, 0.0
  %v94 = vmax.f32 %v89, 0.0
  %v95 = vpack.c.bf16 %v91, %v91
  %v96 = vpack.c.bf16 %v92, %v92
  %v97 = vpack.c.bf16 %v93, %v93
  %v98 = vpack.c.bf16 %v94, %v94
  %99 = vst [vmem:[%s3] sm:$0xf] %v95
  %100 = vst [vmem:[%s3 + $0x4] sm:$0xf] %v96
  %101 = vst [vmem:[%s3 + $0x8] sm:$0xf] %v97
  %102 = vst [vmem:[%s3 + $0xc] sm:$0xf] %v98
  // Predicated region
  $region14: #{model_sep_forward.10} parent=0 // pred_check
    _
  $region15: #{model_sep_forward.10} parent=0 // pred_check_branch
    %104 = sbr.rel (0) target = $region17
  $region16: #{model_sep_forward.10} parent=0 // pred_region
    _
  $region17: #{model_sep_forward.10} parent=0 // pred_fallthru
    _
  // Predicated region
  $region18: #{model_sep_forward.10} parent=0 // pred_check
    _
  $region19: #{model_sep_forward.10} parent=0 // pred_check_branch
    %106 = sbr.rel (0) target = $region21
  $region20: #{model_sep_forward.10} parent=0 // pred_region
    _
  $region21: #{model_sep_forward.10} parent=0 // pred_fallthru
    _

// kernel: model_sep_forward.11
$region0: #{model_sep_forward.11}
  #allocation0 [shape = 'u32[]', space=smem, size = 0x4, offset = 0x4, fixed_abs, tag = 'smem constant byte address 0x4 - core index']
  #allocation1 [shape = 'u32[72,128]{1,0:T(1,128)}', space=vmem, size = 0x9000, scoped, tag = 'internal scratch']
  %s0 = inlined_call_operand.vmem [shape: bf16[32,72], index: 0, kind: input, shape index: {}]
  %s1 = inlined_call_operand.vmem [shape: bf16[72,128], index: 1, kind: input, shape index: {}]
  %s2 = inlined_call_operand.vmem [shape: f32[1,128], index: 2, kind: input, shape index: {}]
  %s3 = inlined_call_operand.vmem [shape: bf16[32,128], index: 3, kind: output, shape index: {}]
  %s4 = sld [smem:[#allocation0]]
  $region22: #{model_sep_forward.11} parent=0
    _
  %s6 = ssub.s32 1, %s4
  %s7 = scalar_select 0, %s6, %s4
  // Predicated region
  $region2: #{model_sep_forward.11} parent=0 // pred_check
    _
  $region3: #{model_sep_forward.11} parent=0 // pred_check_branch
    %9 = sbr.rel (0) target = $region5
  $region4: #{model_sep_forward.11} parent=0 // pred_region
    _
  $region5: #{model_sep_forward.11} parent=0 // pred_fallthru
    _
  // Predicated region
  $region6: #{model_sep_forward.11} parent=0 // pred_check
    _
  $region7: #{model_sep_forward.11} parent=0 // pred_check_branch
    %11 = sbr.rel (0) target = $region9
  $region8: #{model_sep_forward.11} parent=0 // pred_region
    _
  $region9: #{model_sep_forward.11} parent=0 // pred_fallthru
    _
  // Predicated region
  $region10: #{model_sep_forward.11} parent=0 // pred_check
    _
  $region11: #{model_sep_forward.11} parent=0 // pred_check_branch
    %13 = sbr.rel (0) target = $region13
  $region12: #{model_sep_forward.11} parent=0 // pred_region
    _
  $region13: #{model_sep_forward.11} parent=0 // pred_fallthru
    _
  %v15 = vld [vmem:[%s0] sm:$0xf]
  %v16 = vld [vmem:[%s0 + $0x4] sm:$0xf]
  %v17 = vld [vmem:[%s0 + $0x8] sm:$0xf]
  %v18 = vld [vmem:[%s0 + $0xc] sm:$0xf]
  %v19 = vld [vmem:[%s1] sm:$0xf]
  %v20 = vld [vmem:[%s1 + $0x4] sm:$0xf]
  %v21 = vld [vmem:[%s1 + $0x8] sm:$0xf]
  %v22 = vld [vmem:[%s1 + $0xc] sm:$0xf]
  %v23 = vld [vmem:[%s1 + $0x10] sm:$0xf]
  %v24 = vld [vmem:[%s1 + $0x14] sm:$0xf]
  %v25 = vld [vmem:[%s1 + $0x18] sm:$0xf]
  %v26 = vld [vmem:[%s1 + $0x1c] sm:$0xf]
  %v27 = vld [vmem:[%s1 + $0x20] sm:$0xf]
  %v28 = vld [vmem:[%s2] sm:$0x1]
  %v30 = vperm.slane %v28, 0
  %v36 = vunpack.c.l.b16 %v15
  %v37 = vunpack.c.l.b16 %v16
  %v38 = vunpack.c.l.b16 %v17
  %v39 = vunpack.c.l.b16 %v18
  %v40 = vpack.c.b16 %v37, %v36
  %v41 = vpack.c.b16 %v39, %v38
  %v51 = vunpack.c.l.b16 %v19
  %v52 = vunpack.c.l.b16 %v20
  %v53 = vunpack.c.l.b16 %v21
  %v54 = vunpack.c.l.b16 %v22
  %v55 = vunpack.c.l.b16 %v23
  %v56 = vunpack.c.l.b16 %v24
  %v57 = vunpack.c.l.b16 %v25
  %v58 = vunpack.c.l.b16 %v26
  %v59 = vunpack.c.l.b16 %v27
  %v60 = vpack.c.b16 %v52, %v51
  %v61 = vpack.c.b16 %v54, %v53
  %v62 = vpack.c.b16 %v56, %v55
  %v63 = vpack.c.b16 %v58, %v57
  %v64 = vpack.c.b16 %v59, %v59
  %vm69 = vcmask 588800
  %v71 = vsel %vm69, %v40, 0
  %v74 = vsel %vm69, %v41, 0
  %vm76 = vcmask 1043456
  %v78 = vsel %vm76, %v64, 0
  %80 = vmatpush.bf16.msra.mxu0 0
  %81 = vmatpush.bf16.msra.mxu0 0
  %82 = vmatpush.bf16.msra.mxu0 0
  %83 = vmatpush.bf16.msra.mxu0 %v78
  %84 = vmatpush.bf16.msra.mxu0 %v63
  %85 = vmatpush.bf16.msra.mxu0 %v62
  %86 = vmatpush.bf16.msra.mxu0 %v61
  %87 = vmatpush.bf16.msra.mxu0 %v60
  %88 = vmatmul.bf16.gmra.mxu0 %v71
  %v89 = vpop.f32.mrf.mxu0
  %v90 = vadd.f32 %v30, %v89
  %v91 = vpop.f32.mrf.mxu0
  %v92 = vadd.f32 %v30, %v91
  %93 = vmatmul.bf16.gmra.mxu0 %v74
  %v94 = vpop.f32.mrf.mxu0
  %v95 = vadd.f32 %v30, %v94
  %v96 = vpop.f32.mrf.mxu0
  %v97 = vadd.f32 %v30, %v96
  %98 = vdwg.mxu0
  %v99 = vpack.c.bf16 %v90, %v90
  %v100 = vpack.c.bf16 %v92, %v92
  %v101 = vpack.c.bf16 %v95, %v95
  %v102 = vpack.c.bf16 %v97, %v97
  %103 = vst [vmem:[%s3] sm:$0xf] %v99
  %104 = vst [vmem:[%s3 + $0x4] sm:$0xf] %v100
  %105 = vst [vmem:[%s3 + $0x8] sm:$0xf] %v101
  %106 = vst [vmem:[%s3 + $0xc] sm:$0xf] %v102
  // Predicated region
  $region14: #{model_sep_forward.11} parent=0 // pred_check
    _
  $region15: #{model_sep_forward.11} parent=0 // pred_check_branch
    %108 = sbr.rel (0) target = $region17
  $region16: #{model_sep_forward.11} parent=0 // pred_region
    _
  $region17: #{model_sep_forward.11} parent=0 // pred_fallthru
    _
  // Predicated region
  $region18: #{model_sep_forward.11} parent=0 // pred_check
    _
  $region19: #{model_sep_forward.11} parent=0 // pred_check_branch
    %110 = sbr.rel (0) target = $region21
  $region20: #{model_sep_forward.11} parent=0 // pred_region
    _
  $region21: #{model_sep_forward.11} parent=0 // pred_fallthru
    _

// kernel: model_sep_forward.12
$region0: #{model_sep_forward.12}
  #allocation0 [shape = 'u32[]', space=smem, size = 0x4, offset = 0x4, fixed_abs, tag = 'smem constant byte address 0x4 - core index']
  #allocation1 [shape = 'u32[72,128]{1,0:T(1,128)}', space=vmem, size = 0x9000, scoped, tag = 'internal scratch']
  %s0 = inlined_call_operand.vmem [shape: bf16[32,72], index: 0, kind: input, shape index: {}]
  %s1 = inlined_call_operand.vmem [shape: bf16[72,128], index: 1, kind: input, shape index: {}]
  %s2 = inlined_call_operand.vmem [shape: f32[1,128], index: 2, kind: input, shape index: {}, may-alias: {2,4}]
  %s3 = inlined_call_operand.vmem [shape: bf16[128,128], index: 3, kind: input, shape index: {}]
  %s4 = inlined_call_operand.vmem [shape: f32[1,128], index: 4, kind: input, shape index: {}, may-alias: {2,4}]
  %s5 = inlined_call_operand.vmem [shape: bf16[32,128], index: 5, kind: input, shape index: {}]
  %s6 = inlined_call_operand.vmem [shape: bf16[32,128], index: 6, kind: output, shape index: {}]
  %s7 = sld [smem:[#allocation0]]
  $region34: #{model_sep_forward.12} parent=0
    _
  %s9 = ssub.s32 1, %s7
  %s10 = scalar_select 0, %s9, %s7
  // Predicated region
  $region2: #{model_sep_forward.12} parent=0 // pred_check
    _
  $region3: #{model_sep_forward.12} parent=0 // pred_check_branch
    %12 = sbr.rel (0) target = $region5
  $region4: #{model_sep_forward.12} parent=0 // pred_region
    _
  $region5: #{model_sep_forward.12} parent=0 // pred_fallthru
    _
  // Predicated region
  $region6: #{model_sep_forward.12} parent=0 // pred_check
    _
  $region7: #{model_sep_forward.12} parent=0 // pred_check_branch
    %14 = sbr.rel (0) target = $region9
  $region8: #{model_sep_forward.12} parent=0 // pred_region
    _
  $region9: #{model_sep_forward.12} parent=0 // pred_fallthru
    _
  // Predicated region
  $region10: #{model_sep_forward.12} parent=0 // pred_check
    _
  $region11: #{model_sep_forward.12} parent=0 // pred_check_branch
    %16 = sbr.rel (0) target = $region13
  $region12: #{model_sep_forward.12} parent=0 // pred_region
    _
  $region13: #{model_sep_forward.12} parent=0 // pred_fallthru
    _
  // Predicated region
  $region14: #{model_sep_forward.12} parent=0 // pred_check
    _
  $region15: #{model_sep_forward.12} parent=0 // pred_check_branch
    %18 = sbr.rel (0) target = $region17
  $region16: #{model_sep_forward.12} parent=0 // pred_region
    _
  $region17: #{model_sep_forward.12} parent=0 // pred_fallthru
    _
  // Predicated region
  $region18: #{model_sep_forward.12} parent=0 // pred_check
    _
  $region19: #{model_sep_forward.12} parent=0 // pred_check_branch
    %20 = sbr.rel (0) target = $region21
  $region20: #{model_sep_forward.12} parent=0 // pred_region
    _
  $region21: #{model_sep_forward.12} parent=0 // pred_fallthru
    _
  // Predicated region
  $region22: #{model_sep_forward.12} parent=0 // pred_check
    _
  $region23: #{model_sep_forward.12} parent=0 // pred_check_branch
    %22 = sbr.rel (0) target = $region25
  $region24: #{model_sep_forward.12} parent=0 // pred_region
    _
  $region25: #{model_sep_forward.12} parent=0 // pred_fallthru
    _
  %v24 = vld [vmem:[%s0] sm:$0xf]
  %v25 = vld [vmem:[%s0 + $0x4] sm:$0xf]
  %v26 = vld [vmem:[%s0 + $0x8] sm:$0xf]
  %v27 = vld [vmem:[%s0 + $0xc] sm:$0xf]
  %v28 = vunpack.c.l.bf16 %v24
  %v29 = vunpack.c.l.bf16 %v25
  %v30 = vunpack.c.l.bf16 %v26
  %v31 = vunpack.c.l.bf16 %v27
  %v32 = vmax.f32 %v28, 0.0
  %v33 = vmax.f32 %v29, 0.0
  %v34 = vmax.f32 %v30, 0.0
  %v35 = vmax.f32 %v31, 0.0
  %v36 = vpack.c.bf16 %v33, %v32
  %v37 = vpack.c.bf16 %v35, %v34
  %v38 = vld [vmem:[%s1] sm:$0xf]
  %v39 = vld [vmem:[%s1 + $0x4] sm:$0xf]
  %v40 = vld [vmem:[%s1 + $0x8] sm:$0xf]
  %v41 = vld [vmem:[%s1 + $0xc] sm:$0xf]
  %v42 = vld [vmem:[%s1 + $0x10] sm:$0xf]
  %v43 = vld [vmem:[%s1 + $0x14] sm:$0xf]
  %v44 = vld [vmem:[%s1 + $0x18] sm:$0xf]
  %v45 = vld [vmem:[%s1 + $0x1c] sm:$0xf]
  %v46 = vld [vmem:[%s1 + $0x20] sm:$0xf]
  %v47 = vld [vmem:[%s2] sm:$0x1]
  %v49 = vperm.slane %v47, 0
  %v60 = vunpack.c.l.b16 %v38
  %v61 = vunpack.c.l.b16 %v39
  %v62 = vunpack.c.l.b16 %v40
  %v63 = vunpack.c.l.b16 %v41
  %v64 = vunpack.c.l.b16 %v42
  %v65 = vunpack.c.l.b16 %v43
  %v66 = vunpack.c.l.b16 %v44
  %v67 = vunpack.c.l.b16 %v45
  %v68 = vunpack.c.l.b16 %v46
  %v69 = vpack.c.b16 %v61, %v60
  %v70 = vpack.c.b16 %v63, %v62
  %v71 = vpack.c.b16 %v65, %v64
  %v72 = vpack.c.b16 %v67, %v66
  %v73 = vpack.c.b16 %v68, %v68
  %vm78 = vcmask 588800
  %v80 = vsel %vm78, %v36, 0
  %v83 = vsel %vm78, %v37, 0
  %vm85 = vcmask 1043456
  %v87 = vsel %vm85, %v73, 0
  %89 = vmatpush.bf16.msra.mxu0 0
  %90 = vmatpush.bf16.msra.mxu0 0
  %91 = vmatpush.bf16.msra.mxu0 0
  %92 = vmatpush.bf16.msra.mxu0 %v87
  %93 = vmatpush.bf16.msra.mxu0 %v72
  %94 = vmatpush.bf16.msra.mxu0 %v71
  %95 = vmatpush.bf16.msra.mxu0 %v70
  %96 = vmatpush.bf16.msra.mxu0 %v69
  %97 = vmatmul.bf16.gmra.mxu0 %v80
  %v98 = vpop.f32.mrf.mxu0
  %v99 = vadd.f32 %v49, %v98
  %v100 = vpop.f32.mrf.mxu0
  %v101 = vadd.f32 %v49, %v100
  %102 = vmatmul.bf16.gmra.mxu0 %v83
  %v103 = vpop.f32.mrf.mxu0
  %v104 = vadd.f32 %v49, %v103
  %v105 = vpop.f32.mrf.mxu0
  %v106 = vadd.f32 %v49, %v105
  %107 = vdwg.mxu0
  %v108 = vmax.f32 %v99, 0.0
  %v109 = vmax.f32 %v101, 0.0
  %v110 = vmax.f32 %v104, 0.0
  %v111 = vmax.f32 %v106, 0.0
  %v112 = vpack.c.bf16 %v109, %v108
  %v113 = vpack.c.bf16 %v111, %v110
  %v114 = vld [vmem:[%s3] sm:$0xf]
  %v115 = vld [vmem:[%s3 + $0x4] sm:$0xf]
  %v116 = vld [vmem:[%s3 + $0x8] sm:$0xf]
  %v117 = vld [vmem:[%s3 + $0xc] sm:$0xf]
  %v118 = vld [vmem:[%s3 + $0x10] sm:$0xf]
  %v119 = vld [vmem:[%s3 + $0x14] sm:$0xf]
  %v120 = vld [vmem:[%s3 + $0x18] sm:$0xf]
  %v121 = vld [vmem:[%s3 + $0x1c] sm:$0xf]
  %v122 = vld [vmem:[%s3 + $0x20] sm:$0xf]
  %v123 = vld [vmem:[%s3 + $0x24] sm:$0xf]
  %v124 = vld [vmem:[%s3 + $0x28] sm:$0xf]
  %v125 = vld [vmem:[%s3 + $0x2c] sm:$0xf]
  %v126 = vld [vmem:[%s3 + $0x30] sm:$0xf]
  %v127 = vld [vmem:[%s3 + $0x34] sm:$0xf]
  %v128 = vld [vmem:[%s3 + $0x38] sm:$0xf]
  %v129 = vld [vmem:[%s3 + $0x3c] sm:$0xf]
  %v130 = vld [vmem:[%s4] sm:$0x1]
  %v132 = vperm.slane %v130, 0
  %v150 = vunpack.c.l.b16 %v114
  %v151 = vunpack.c.l.b16 %v115
  %v152 = vunpack.c.l.b16 %v116
  %v153 = vunpack.c.l.b16 %v117
  %v154 = vunpack.c.l.b16 %v118
  %v155 = vunpack.c.l.b16 %v119
  %v156 = vunpack.c.l.b16 %v120
  %v157 = vunpack.c.l.b16 %v121
  %v158 = vunpack.c.l.b16 %v122
  %v159 = vunpack.c.l.b16 %v123
  %v160 = vunpack.c.l.b16 %v124
  %v161 = vunpack.c.l.b16 %v125
  %v162 = vunpack.c.l.b16 %v126
  %v163 = vunpack.c.l.b16 %v127
  %v164 = vunpack.c.l.b16 %v128
  %v165 = vunpack.c.l.b16 %v129
  %v166 = vpack.c.b16 %v151, %v150
  %v167 = vpack.c.b16 %v153, %v152
  %v168 = vpack.c.b16 %v155, %v154
  %v169 = vpack.c.b16 %v157, %v156
  %v170 = vpack.c.b16 %v159, %v158
  %v171 = vpack.c.b16 %v161, %v160
  %v172 = vpack.c.b16 %v163, %v162
  %v173 = vpack.c.b16 %v165, %v164
  %182 = vmatpush.bf16.msra.mxu0 %v173
  %183 = vmatpush.bf16.msra.mxu0 %v172
  %184 = vmatpush.bf16.msra.mxu0 %v171
  %185 = vmatpush.bf16.msra.mxu0 %v170
  %186 = vmatpush.bf16.msra.mxu0 %v169
  %187 = vmatpush.bf16.msra.mxu0 %v168
  %188 = vmatpush.bf16.msra.mxu0 %v167
  %189 = vmatpush.bf16.msra.mxu0 %v166
  %190 = vmatmul.bf16.gmra.mxu0 %v112
  %v191 = vpop.f32.mrf.mxu0
  %v192 = vadd.f32 %v132, %v191
  %v193 = vpop.f32.mrf.mxu0
  %v194 = vadd.f32 %v132, %v193
  %195 = vmatmul.bf16.gmra.mxu0 %v113
  %v196 = vpop.f32.mrf.mxu0
  %v197 = vadd.f32 %v132, %v196
  %v198 = vpop.f32.mrf.mxu0
  %v199 = vadd.f32 %v132, %v198
  %200 = vdwg.mxu0
  %v201 = vld [vmem:[%s5] sm:$0xf]
  %v202 = vld [vmem:[%s5 + $0x4] sm:$0xf]
  %v203 = vld [vmem:[%s5 + $0x8] sm:$0xf]
  %v204 = vld [vmem:[%s5 + $0xc] sm:$0xf]
  %v205 = vunpack.c.l.bf16 %v201
  %v206 = vunpack.c.l.bf16 %v202
  %v207 = vunpack.c.l.bf16 %v203
  %v208 = vunpack.c.l.bf16 %v204
  %v209 = vadd.f32 %v192, %v205
  %v210 = vadd.f32 %v194, %v206
  %v211 = vadd.f32 %v197, %v207
  %v212 = vadd.f32 %v199, %v208
  %v213 = vpack.c.bf16 %v209, %v209
  %v214 = vpack.c.bf16 %v210, %v210
  %v215 = vpack.c.bf16 %v211, %v211
  %v216 = vpack.c.bf16 %v212, %v212
  %217 = vst [vmem:[%s6] sm:$0xf] %v213
  %218 = vst [vmem:[%s6 + $0x4] sm:$0xf] %v214
  %219 = vst [vmem:[%s6 + $0x8] sm:$0xf] %v215
  %220 = vst [vmem:[%s6 + $0xc] sm:$0xf] %v216
  // Predicated region
  $region26: #{model_sep_forward.12} parent=0 // pred_check
    _
  $region27: #{model_sep_forward.12} parent=0 // pred_check_branch
    %222 = sbr.rel (0) target = $region29
  $region28: #{model_sep_forward.12} parent=0 // pred_region
    _
  $region29: #{model_sep_forward.12} parent=0 // pred_fallthru
    _
  // Predicated region
  $region30: #{model_sep_forward.12} parent=0 // pred_check
    _
  $region31: #{model_sep_forward.12} parent=0 // pred_check_branch
    %224 = sbr.rel (0) target = $region33
  $region32: #{model_sep_forward.12} parent=0 // pred_region
    _
  $region33: #{model_sep_forward.12} parent=0 // pred_fallthru
    _

// kernel: model_sep_forward.13
$region0: #{model_sep_forward.13}
  #allocation0 [shape = 'u32[]', space=smem, size = 0x4, offset = 0x4, fixed_abs, tag = 'smem constant byte address 0x4 - core index']
  #allocation1 [shape = 'u32[72,128]{1,0:T(1,128)}', space=vmem, size = 0x9000, scoped, tag = 'internal scratch']
  #allocation2 [shape = 'f32[1,128]{1,0:T(1,128)}', space=vmem, size = 0x200, scoped, tag = 'scratch operand']
  %s0 = inlined_call_operand.vmem [shape: bf16[8,128], index: 0, kind: input, shape index: {}]
  %s1 = inlined_call_operand.vmem [shape: bf16[128,128], index: 1, kind: input, shape index: {}]
  %s2 = inlined_call_operand.vmem [shape: f32[1,128], index: 2, kind: input, shape index: {}]
  %s3 = inlined_call_operand.vmem [shape: f32[128,128], index: 3, kind: input, shape index: {}]
  %s4 = inlined_call_operand.vmem [shape: f32[1,128], index: 4, kind: input, shape index: {}]
  %s5 = inlined_call_operand.vmem [shape: bf16[8,128], index: 5, kind: output, shape index: {0}]
  %s6 = inlined_call_operand.hbm [shape: f32[1,1], index: 6, kind: output, shape index: {1}]
  %s7 = inlined_call_operand.hbm [shape: f32[1,1], index: 7, kind: output, shape index: {2}]
  %8 = xla_tuple %s5, %s6, %s7
  %s9 = sld [smem:[#allocation0]]
  $region54: #{model_sep_forward.13} parent=0
    _
  %s11 = ssub.s32 1, %s9
  %s12 = scalar_select 0, %s11, %s9
  $region1: #{model_sep_forward.13} parent=0
    #allocation3 [shape = 'u8[512]{0}', space=vmem, size = 0x400, scoped, tag = 'output window, operand 1, single buffered']
    #allocation4 [shape = 's32[1]{0}', space=sflag, size = 0x4, scoped, tag = 'scoped memory for model_sep_forward.13']
    #allocation5 [shape = 'u8[512]{0}', space=vmem, size = 0x400, scoped, tag = 'output window, operand 2, single buffered']
    #allocation6 [shape = 's32[1]{0}', space=sflag, size = 0x4, scoped, tag = 'scoped memory for model_sep_forward.13']
    %13 = vsyncpa [#allocation4], 0
    %14 = vsyncpa [#allocation6], 0
    // Predicated region
    $region2: #{model_sep_forward.13} parent=1 // pred_check
      _
    $region3: #{model_sep_forward.13} parent=1 // pred_check_branch
      %16 = sbr.rel (0) target = $region5
    $region4: #{model_sep_forward.13} parent=1 // pred_region
      _
    $region5: #{model_sep_forward.13} parent=1 // pred_fallthru
      _
    // Predicated region
    $region6: #{model_sep_forward.13} parent=1 // pred_check
      _
    $region7: #{model_sep_forward.13} parent=1 // pred_check_branch
      %18 = sbr.rel (0) target = $region9
    $region8: #{model_sep_forward.13} parent=1 // pred_region
      _
    $region9: #{model_sep_forward.13} parent=1 // pred_fallthru
      _
    // Predicated region
    $region10: #{model_sep_forward.13} parent=1 // pred_check
      _
    $region11: #{model_sep_forward.13} parent=1 // pred_check_branch
      %20 = sbr.rel (0) target = $region13
    $region12: #{model_sep_forward.13} parent=1 // pred_region
      _
    $region13: #{model_sep_forward.13} parent=1 // pred_fallthru
      _
    // Predicated region
    $region14: #{model_sep_forward.13} parent=1 // pred_check
      _
    $region15: #{model_sep_forward.13} parent=1 // pred_check_branch
      %22 = sbr.rel (0) target = $region17
    $region16: #{model_sep_forward.13} parent=1 // pred_region
      _
    $region17: #{model_sep_forward.13} parent=1 // pred_fallthru
      _
    // Predicated region
    $region18: #{model_sep_forward.13} parent=1 // pred_check
      _
    $region19: #{model_sep_forward.13} parent=1 // pred_check_branch
      %24 = sbr.rel (0) target = $region21
    $region20: #{model_sep_forward.13} parent=1 // pred_region
      _
    $region21: #{model_sep_forward.13} parent=1 // pred_fallthru
      _
    %p25 = scmp.eq.s32.totalorder 0, 0
    // Predicated region
    $region22: #{model_sep_forward.13} parent=1 // pred_check
      %p26 = pneg %p25
    $region23: #{model_sep_forward.13} parent=1 // pred_check_branch
      %28 = sbr.rel (%p26) target = $region25
    $region24: #{model_sep_forward.13} parent=1 // pred_region
      %29 = vst [vmem:[#allocation2] sm:$0x1] 0.0
      %vm30 = vcmask 0
      %31 = vst.msk [vmem:[#allocation3] sm:$0x1] %vm30, 0.0
    $region25: #{model_sep_forward.13} parent=1 // pred_fallthru
      _
    %v32 = vld [vmem:[%s0] sm:$0xf]
    %v33 = vunpack.c.l.bf16 %v32
    %v34 = vmax.f32 %v33, 0.0
    %v35 = vpack.c.bf16 %v34, %v34
    %v36 = vld [vmem:[%s1] sm:$0xf]
    %v37 = vld [vmem:[%s1 + $0x4] sm:$0xf]
    %v38 = vld [vmem:[%s1 + $0x8] sm:$0xf]
    %v39 = vld [vmem:[%s1 + $0xc] sm:$0xf]
    %v40 = vld [vmem:[%s1 + $0x10] sm:$0xf]
    %v41 = vld [vmem:[%s1 + $0x14] sm:$0xf]
    %v42 = vld [vmem:[%s1 + $0x18] sm:$0xf]
    %v43 = vld [vmem:[%s1 + $0x1c] sm:$0xf]
    %v44 = vld [vmem:[%s1 + $0x20] sm:$0xf]
    %v45 = vld [vmem:[%s1 + $0x24] sm:$0xf]
    %v46 = vld [vmem:[%s1 + $0x28] sm:$0xf]
    %v47 = vld [vmem:[%s1 + $0x2c] sm:$0xf]
    %v48 = vld [vmem:[%s1 + $0x30] sm:$0xf]
    %v49 = vld [vmem:[%s1 + $0x34] sm:$0xf]
    %v50 = vld [vmem:[%s1 + $0x38] sm:$0xf]
    %v51 = vld [vmem:[%s1 + $0x3c] sm:$0xf]
    %v52 = vld [vmem:[%s2] sm:$0x1]
    %v54 = vperm.slane %v52, 0
    %v72 = vunpack.c.l.b16 %v36
    %v73 = vunpack.c.l.b16 %v37
    %v74 = vunpack.c.l.b16 %v38
    %v75 = vunpack.c.l.b16 %v39
    %v76 = vunpack.c.l.b16 %v40
    %v77 = vunpack.c.l.b16 %v41
    %v78 = vunpack.c.l.b16 %v42
    %v79 = vunpack.c.l.b16 %v43
    %v80 = vunpack.c.l.b16 %v44
    %v81 = vunpack.c.l.b16 %v45
    %v82 = vunpack.c.l.b16 %v46
    %v83 = vunpack.c.l.b16 %v47
    %v84 = vunpack.c.l.b16 %v48
    %v85 = vunpack.c.l.b16 %v49
    %v86 = vunpack.c.l.b16 %v50
    %v87 = vunpack.c.l.b16 %v51
    %v88 = vpack.c.b16 %v73, %v72
    %v89 = vpack.c.b16 %v75, %v74
    %v90 = vpack.c.b16 %v77, %v76
    %v91 = vpack.c.b16 %v79, %v78
    %v92 = vpack.c.b16 %v81, %v80
    %v93 = vpack.c.b16 %v83, %v82
    %v94 = vpack.c.b16 %v85, %v84
    %v95 = vpack.c.b16 %v87, %v86
    %104 = vmatpush.bf16.msra.mxu0 %v95
    %105 = vmatpush.bf16.msra.mxu0 %v94
    %106 = vmatpush.bf16.msra.mxu0 %v93
    %107 = vmatpush.bf16.msra.mxu0 %v92
    %108 = vmatpush.bf16.msra.mxu0 %v91
    %109 = vmatpush.bf16.msra.mxu0 %v90
    %110 = vmatpush.bf16.msra.mxu0 %v89
    %111 = vmatpush.bf16.msra.mxu0 %v88
    %112 = vmatmul.bf16.gmra.mxu0 %v35
    %v113 = vpop.f32.mrf.mxu0
    %v114 = vadd.f32 %v54, %v113
    %v115 = vpop.f32.mrf.mxu0
    %116 = vdwg.mxu0
    %v117 = vld [vmem:[%s3] sm:$0xff]
    %v118 = vld [vmem:[%s3 + $0x8] sm:$0xff]
    %v119 = vld [vmem:[%s3 + $0x10] sm:$0xff]
    %v120 = vld [vmem:[%s3 + $0x18] sm:$0xff]
    %v121 = vld [vmem:[%s3 + $0x20] sm:$0xff]
    %v122 = vld [vmem:[%s3 + $0x28] sm:$0xff]
    %v123 = vld [vmem:[%s3 + $0x30] sm:$0xff]
    %v124 = vld [vmem:[%s3 + $0x38] sm:$0xff]
    %v125 = vld [vmem:[%s3 + $0x40] sm:$0xff]
    %v126 = vld [vmem:[%s3 + $0x48] sm:$0xff]
    %v127 = vld [vmem:[%s3 + $0x50] sm:$0xff]
    %v128 = vld [vmem:[%s3 + $0x58] sm:$0xff]
    %v129 = vld [vmem:[%s3 + $0x60] sm:$0xff]
    %v130 = vld [vmem:[%s3 + $0x68] sm:$0xff]
    %v131 = vld [vmem:[%s3 + $0x70] sm:$0xff]
    %v132 = vld [vmem:[%s3 + $0x78] sm:$0xff]
    %v133 = vmul.f32 %v114, %v114
    %134 = vadd.xlane.f32.xlu0 %v133
    %v135 = vpop.xlane.xlu0 %134
    %136 = vmatpush.xpose.msra.mxu0 %v132
    %137 = vmatpush.xpose.msra.mxu0 %v131
    %138 = vmatpush.xpose.msra.mxu0 %v130
    %139 = vmatpush.xpose.msra.mxu0 %v129
    %140 = vmatpush.xpose.msra.mxu0 %v128
    %141 = vmatpush.xpose.msra.mxu0 %v127
    %142 = vmatpush.xpose.msra.mxu0 %v126
    %143 = vmatpush.xpose.msra.mxu0 %v125
    %144 = vmatpush.xpose.msra.mxu0 %v124
    %145 = vmatpush.xpose.msra.mxu0 %v123
    %146 = vmatpush.xpose.msra.mxu0 %v122
    %147 = vmatpush.xpose.msra.mxu0 %v121
    %148 = vmatpush.xpose.msra.mxu0 %v120
    %149 = vmatpush.xpose.msra.mxu0 %v119
    %150 = vmatpush.xpose.msra.mxu0 %v118
    %151 = vmatpush.xpose.msra.mxu0 %v117
    %152 = vmatmul.f32.gmra.mxu0 %v114
    %v153 = vpop.f32.mrf.mxu0
    %v154 = vadd.f32 0.0, %v153
    %155 = vdwg.mxu0
    %v156 = vld [vmem:[%s4] sm:$0x1]
    %v158 = vperm.slane %v156, 0
    %v160 = vadd.f32 %v135, %v158
    %v161 = vmul.f32 %v154, 2.0
    %v162 = vsub.f32 %v160, %v161
    %v163 = vlaneseq
    %v164 = vand.u32 %v163, 127
    %vm165 = vcmp.lt.s32.totalorder %v164, 16
    %v166 = vsel %vm165, %v162, 3e+38
    %167 = vmin.xlane.f32.xlu0 %v166
    %v168 = vpop.xlane.xlu0 %167
    %vm169 = vcmp.le.f32.partialorder %v166, %v168
    %v170 = vsel %vm169, %v164, 128
    %v171 = vand.u32 %v170, 65535
    %v172 = vshra.s32 %v170, 16
    %v173 = vcvt.s32.f32 %v171
    %v174 = vcvt.s32.f32 %v172
    %175 = vmin.xlane.f32.xlu0 %v174
    %v176 = vpop.xlane.xlu0 %175
    %vm177 = vcmp.eq.f32.partialorder %v174, %v176
    %v178 = vsel %vm177, %v173, inf
    %179 = vmin.xlane.f32.xlu0 %v178
    %v180 = vpop.xlane.xlu0 %179
    %v181 = vcvt.f32.s32 %v180
    %v182 = vcvt.f32.s32 %v176
    %v183 = vshll.u32 %v182, 16
    %v184 = vadd.s32 %v183, %v181
    %vm185 = vcmp.eq.s32.totalorder %v164, %v184
    %v186 = vsel %vm185, 1, 0
    %v187 = vcvt.s32.f32 %v186
    %188 = vmatpush.msra.mxu0 %v132
    %189 = vmatpush.msra.mxu0 %v131
    %190 = vmatpush.msra.mxu0 %v130
    %191 = vmatpush.msra.mxu0 %v129
    %192 = vmatpush.msra.mxu0 %v128
    %193 = vmatpush.msra.mxu0 %v127
    %194 = vmatpush.msra.mxu0 %v126
    %195 = vmatpush.msra.mxu0 %v125
    %196 = vmatpush.msra.mxu0 %v124
    %197 = vmatpush.msra.mxu0 %v123
    %198 = vmatpush.msra.mxu0 %v122
    %199 = vmatpush.msra.mxu0 %v121
    %200 = vmatpush.msra.mxu0 %v120
    %201 = vmatpush.msra.mxu0 %v119
    %202 = vmatpush.msra.mxu0 %v118
    %203 = vmatpush.msra.mxu0 %v117
    %204 = vmatmul.f32.gmra.mxu0 %v187
    %v205 = vpop.f32.mrf.mxu0
    %v206 = vadd.f32 0.0, %v205
    %207 = vdwg.mxu0
    %v208 = vpack.c.bf16 %v206, %v206
    %209 = vst [vmem:[%s5] sm:$0xf] %v208
    %s210 = smul.u32 0, 8
    %v211 = vlaneseq
    %v212 = vshrl.u32 %v211, 7
    %v213 = vstv %s210
    %v214 = vadd.s32 %v213, %v212
    %vm215 = vcmp.lt.s32.totalorder %v214, 2
    %v216 = vsel %vm215, 1, 0
    %v217 = vcvt.s32.f32 %v216
    %v218 = vld [vmem:[#allocation2] sm:$0x1]
    %v219 = vmul.f32 %v187, %v217
    %v220 = vrot.slane %v219, 4
    %v221 = vadd.f32 %v219, %v220
    %v222 = vrot.slane %v221, 2
    %v223 = vadd.f32 %v221, %v222
    %v224 = vrot.slane %v223, 1
    %v225 = vadd.f32 %v223, %v224
    %v226 = vadd.f32 %v218, %v225
    %227 = vst [vmem:[#allocation2] sm:$0x1] %v226
    %v228 = vsub.f32 %v206, %v114
    %v229 = vmul.f32 %v228, %v217
    %v230 = vld [vmem:[#allocation3] sm:$0x1]
    %v231 = vmul.f32 %v229, %v229
    %232 = vadd.xlane.f32.xlu0 %v231
    %v233 = vpop.xlane.xlu0 %232
    %v234 = vrot.slane %v233, 4
    %v235 = vadd.f32 %v233, %v234
    %v236 = vrot.slane %v235, 2
    %v237 = vadd.f32 %v235, %v236
    %v238 = vrot.slane %v237, 1
    %v239 = vadd.f32 %v237, %v238
    %s240 = vtos %v239
    %v241 = vstv %s240
    %v242 = vadd.f32 %v230, %v241
    %vm243 = vcmask 0
    %244 = vst.msk [vmem:[#allocation3] sm:$0x1] %vm243, %v242
    // Predicated region
    $region26: #{model_sep_forward.13} parent=1 // pred_check
      %p245 = pneg %p25
    $region27: #{model_sep_forward.13} parent=1 // pred_check_branch
      %247 = sbr.rel (%p245) target = $region29
    $region28: #{model_sep_forward.13} parent=1 // pred_region
      %v248 = vld [vmem:[#allocation3] sm:$0x1]
      %v249 = vmul.f32 %v248, 0.00390625
      %250 = vst.msk [vmem:[#allocation3] sm:$0x1] %vm243, %v249
      %v251 = vld [vmem:[#allocation2] sm:$0x1]
      %v252 = vmul.f32 %v251, 0.5
      %v253 = vadd.f32 %v252, 1e-10
      %v254 = vlog2.pop %v253
      %v255 = vmul.f32 %v254, 0.6931472
      %v256 = vmul.f32 %v252, %v255
      %vm257 = vcmask 1040384
      %v258 = vsel %vm257, %v256, 0.0
      %259 = vadd.xlane.f32.xlu0 %v258
      %v260 = vpop.xlane.xlu0 %259
      %v261 = vrot.slane %v260, 4
      %v262 = vadd.f32 %v260, %v261
      %v263 = vrot.slane %v262, 2
      %v264 = vadd.f32 %v262, %v263
      %v265 = vrot.slane %v264, 1
      %v266 = vadd.f32 %v264, %v265
      %s267 = vtos %v266
      %s268 = ssub.f32 0.0, %s267
      %v269 = vstv %s268
      %v270 = vmul.f32 %v269, 1.442695
      %v271 = vpow.pop %v270
      %s272 = vtos %v271
      %v273 = vstv %s272
      %274 = vst.msk [vmem:[#allocation5] sm:$0x1] %vm243, %v273
    $region29: #{model_sep_forward.13} parent=1 // pred_fallthru
      _
    // Predicated region
    $region30: #{model_sep_forward.13} parent=1 // pred_check
      _
    $region31: #{model_sep_forward.13} parent=1 // pred_check_branch
      %276 = sbr.rel (0) target = $region33
    $region32: #{model_sep_forward.13} parent=1 // pred_region
      _
    $region33: #{model_sep_forward.13} parent=1 // pred_fallthru
      _
    // Predicated region
    $region34: #{model_sep_forward.13} parent=1 // pred_check
      _
    $region35: #{model_sep_forward.13} parent=1 // pred_check_branch
      %278 = sbr.rel (0) target = $region37
    $region36: #{model_sep_forward.13} parent=1 // pred_region
      %280 = vsyncadd [#allocation4], 0
      %s282 = sshll.u32 [#allocation3], 4
      %s283 = int_to_ptr.vmem [resolvable:$true] %s282
      %s284 = sshll.u32 %s6, 4
      %s285 = int_to_ptr.hbm [resolvable:$true] %s284
      %287 = dma.vmem_to_hbm [thread:$0]  %s283, 16, %s285, [#allocation4]
    $region37: #{model_sep_forward.13} parent=1 // pred_fallthru
      _
    // Predicated region
    $region38: #{model_sep_forward.13} parent=1 // pred_check
      _
    $region39: #{model_sep_forward.13} parent=1 // pred_check_branch
      %289 = sbr.rel (0) target = $region41
    $region40: #{model_sep_forward.13} parent=1 // pred_region
      %291 = vsyncadd [#allocation6], 0
      %s293 = sshll.u32 [#allocation5], 4
      %s294 = int_to_ptr.vmem [resolvable:$true] %s293
      %s295 = sshll.u32 %s7, 4
      %s296 = int_to_ptr.hbm [resolvable:$true] %s295
      %298 = dma.vmem_to_hbm [thread:$0]  %s294, 16, %s296, [#allocation6]
    $region41: #{model_sep_forward.13} parent=1 // pred_fallthru
      _
    // Predicated region
    $region42: #{model_sep_forward.13} parent=1 // pred_check
      _
    $region43: #{model_sep_forward.13} parent=1 // pred_check_branch
      %300 = sbr.rel (0) target = $region45
    $region44: #{model_sep_forward.13} parent=1 // pred_region
      _
    $region45: #{model_sep_forward.13} parent=1 // pred_fallthru
      _
    // Predicated region
    $region46: #{model_sep_forward.13} parent=1 // pred_check
      _
    $region47: #{model_sep_forward.13} parent=1 // pred_check_branch
      %302 = sbr.rel (0) target = $region49
    $region48: #{model_sep_forward.13} parent=1 // pred_region
      %304 = dma.done [#allocation4], 16
    $region49: #{model_sep_forward.13} parent=1 // pred_fallthru
      _
    // Predicated region
    $region50: #{model_sep_forward.13} parent=1 // pred_check
      _
    $region51: #{model_sep_forward.13} parent=1 // pred_check_branch
      %306 = sbr.rel (0) target = $region53
    $region52: #{model_sep_forward.13} parent=1 // pred_region
      %308 = dma.done [#allocation6], 16
    $region53: #{model_sep_forward.13} parent=1 // pred_fallthru
      _
    %309 = vsyncpa [#allocation4], 1
    %310 = vsyncpa [#allocation6], 1

// kernel: model_sep_forward.14
$region0: #{model_sep_forward.14}
  #allocation0 [shape = 'u32[]', space=smem, size = 0x4, offset = 0x4, fixed_abs, tag = 'smem constant byte address 0x4 - core index']
  #allocation1 [shape = 'u32[72,128]{1,0:T(1,128)}', space=vmem, size = 0x9000, scoped, tag = 'internal scratch']
  %s0 = inlined_call_operand.vmem [shape: bf16[32,18], index: 0, kind: input, shape index: {}]
  %s1 = inlined_call_operand.vmem [shape: bf16[18,128], index: 1, kind: input, shape index: {}]
  %s2 = inlined_call_operand.vmem [shape: f32[1,128], index: 2, kind: input, shape index: {}]
  %s3 = inlined_call_operand.vmem [shape: bf16[32,128], index: 3, kind: output, shape index: {}]
  %s4 = sld [smem:[#allocation0]]
  $region22: #{model_sep_forward.14} parent=0
    _
  %s6 = ssub.s32 1, %s4
  %s7 = scalar_select 0, %s6, %s4
  // Predicated region
  $region2: #{model_sep_forward.14} parent=0 // pred_check
    _
  $region3: #{model_sep_forward.14} parent=0 // pred_check_branch
    %9 = sbr.rel (0) target = $region5
  $region4: #{model_sep_forward.14} parent=0 // pred_region
    _
  $region5: #{model_sep_forward.14} parent=0 // pred_fallthru
    _
  // Predicated region
  $region6: #{model_sep_forward.14} parent=0 // pred_check
    _
  $region7: #{model_sep_forward.14} parent=0 // pred_check_branch
    %11 = sbr.rel (0) target = $region9
  $region8: #{model_sep_forward.14} parent=0 // pred_region
    _
  $region9: #{model_sep_forward.14} parent=0 // pred_fallthru
    _
  // Predicated region
  $region10: #{model_sep_forward.14} parent=0 // pred_check
    _
  $region11: #{model_sep_forward.14} parent=0 // pred_check_branch
    %13 = sbr.rel (0) target = $region13
  $region12: #{model_sep_forward.14} parent=0 // pred_region
    _
  $region13: #{model_sep_forward.14} parent=0 // pred_fallthru
    _
  %v15 = vld [vmem:[%s0] sm:$0xf]
  %v16 = vld [vmem:[%s0 + $0x4] sm:$0xf]
  %v17 = vld [vmem:[%s0 + $0x8] sm:$0xf]
  %v18 = vld [vmem:[%s0 + $0xc] sm:$0xf]
  %v19 = vld [vmem:[%s1] sm:$0xf]
  %v20 = vld [vmem:[%s1 + $0x4] sm:$0xf]
  %v21 = vld [vmem:[%s1 + $0x8] sm:$0x1]
  %v22 = vld [vmem:[%s2] sm:$0x1]
  %v24 = vperm.slane %v22, 0
  %v30 = vunpack.c.l.b16 %v15
  %v31 = vunpack.c.l.b16 %v16
  %v32 = vunpack.c.l.b16 %v17
  %v33 = vunpack.c.l.b16 %v18
  %v34 = vpack.c.b16 %v31, %v30
  %v35 = vpack.c.b16 %v33, %v32
  %v39 = vunpack.c.l.b16 %v19
  %v40 = vunpack.c.l.b16 %v20
  %v41 = vunpack.c.l.b16 %v21
  %v42 = vpack.c.b16 %v40, %v39
  %v43 = vpack.c.b16 %v41, %v41
  %vm45 = vcmask 146432
  %v47 = vsel %vm45, %v34, 0
  %v50 = vsel %vm45, %v35, 0
  %vm52 = vcmask 1040384
  %v54 = vsel %vm52, %v43, 0
  %56 = vmatpush.bf16.msra.mxu0 0
  %57 = vmatpush.bf16.msra.mxu0 0
  %58 = vmatpush.bf16.msra.mxu0 0
  %59 = vmatpush.bf16.msra.mxu0 0
  %60 = vmatpush.bf16.msra.mxu0 0
  %61 = vmatpush.bf16.msra.mxu0 0
  %62 = vmatpush.bf16.msra.mxu0 %v54
  %63 = vmatpush.bf16.msra.mxu0 %v42
  %64 = vmatmul.bf16.gmra.mxu0 %v47
  %v65 = vpop.f32.mrf.mxu0
  %v66 = vadd.f32 %v24, %v65
  %v67 = vpop.f32.mrf.mxu0
  %v68 = vadd.f32 %v24, %v67
  %69 = vmatmul.bf16.gmra.mxu0 %v50
  %v70 = vpop.f32.mrf.mxu0
  %v71 = vadd.f32 %v24, %v70
  %v72 = vpop.f32.mrf.mxu0
  %v73 = vadd.f32 %v24, %v72
  %74 = vdwg.mxu0
  %v75 = vpack.c.bf16 %v66, %v66
  %v76 = vpack.c.bf16 %v68, %v68
  %v77 = vpack.c.bf16 %v71, %v71
  %v78 = vpack.c.bf16 %v73, %v73
  %79 = vst [vmem:[%s3] sm:$0xf] %v75
  %80 = vst [vmem:[%s3 + $0x4] sm:$0xf] %v76
  %81 = vst [vmem:[%s3 + $0x8] sm:$0xf] %v77
  %82 = vst [vmem:[%s3 + $0xc] sm:$0xf] %v78
  // Predicated region
  $region14: #{model_sep_forward.14} parent=0 // pred_check
    _
  $region15: #{model_sep_forward.14} parent=0 // pred_check_branch
    %84 = sbr.rel (0) target = $region17
  $region16: #{model_sep_forward.14} parent=0 // pred_region
    _
  $region17: #{model_sep_forward.14} parent=0 // pred_fallthru
    _
  // Predicated region
  $region18: #{model_sep_forward.14} parent=0 // pred_check
    _
  $region19: #{model_sep_forward.14} parent=0 // pred_check_branch
    %86 = sbr.rel (0) target = $region21
  $region20: #{model_sep_forward.14} parent=0 // pred_region
    _
  $region21: #{model_sep_forward.14} parent=0 // pred_fallthru
    _

// kernel: model_sep_forward.16
$region0: #{model_sep_forward.16}
  #allocation0 [shape = 'u32[]', space=smem, size = 0x4, offset = 0x4, fixed_abs, tag = 'smem constant byte address 0x4 - core index']
  #allocation1 [shape = 'u32[72,128]{1,0:T(1,128)}', space=vmem, size = 0x9000, scoped, tag = 'internal scratch']
  %s0 = inlined_call_operand.vmem [shape: bf16[32,72], index: 0, kind: input, shape index: {}]
  %s1 = inlined_call_operand.vmem [shape: bf16[72,128], index: 1, kind: input, shape index: {}]
  %s2 = inlined_call_operand.vmem [shape: f32[1,128], index: 2, kind: input, shape index: {}]
  %s3 = inlined_call_operand.vmem [shape: bf16[32,128], index: 3, kind: output, shape index: {}]
  %s4 = sld [smem:[#allocation0]]
  $region22: #{model_sep_forward.16} parent=0
    _
  %s6 = ssub.s32 1, %s4
  %s7 = scalar_select 0, %s6, %s4
  // Predicated region
  $region2: #{model_sep_forward.16} parent=0 // pred_check
    _
  $region3: #{model_sep_forward.16} parent=0 // pred_check_branch
    %9 = sbr.rel (0) target = $region5
  $region4: #{model_sep_forward.16} parent=0 // pred_region
    _
  $region5: #{model_sep_forward.16} parent=0 // pred_fallthru
    _
  // Predicated region
  $region6: #{model_sep_forward.16} parent=0 // pred_check
    _
  $region7: #{model_sep_forward.16} parent=0 // pred_check_branch
    %11 = sbr.rel (0) target = $region9
  $region8: #{model_sep_forward.16} parent=0 // pred_region
    _
  $region9: #{model_sep_forward.16} parent=0 // pred_fallthru
    _
  // Predicated region
  $region10: #{model_sep_forward.16} parent=0 // pred_check
    _
  $region11: #{model_sep_forward.16} parent=0 // pred_check_branch
    %13 = sbr.rel (0) target = $region13
  $region12: #{model_sep_forward.16} parent=0 // pred_region
    _
  $region13: #{model_sep_forward.16} parent=0 // pred_fallthru
    _
  %v15 = vld [vmem:[%s0] sm:$0xf]
  %v16 = vld [vmem:[%s0 + $0x4] sm:$0xf]
  %v17 = vld [vmem:[%s0 + $0x8] sm:$0xf]
  %v18 = vld [vmem:[%s0 + $0xc] sm:$0xf]
  %v19 = vunpack.c.l.bf16 %v15
  %v20 = vunpack.c.l.bf16 %v16
  %v21 = vunpack.c.l.bf16 %v17
  %v22 = vunpack.c.l.bf16 %v18
  %v23 = vmax.f32 %v19, 0.0
  %v24 = vmax.f32 %v20, 0.0
  %v25 = vmax.f32 %v21, 0.0
  %v26 = vmax.f32 %v22, 0.0
  %v27 = vpack.c.bf16 %v24, %v23
  %v28 = vpack.c.bf16 %v26, %v25
  %v29 = vld [vmem:[%s1] sm:$0xf]
  %v30 = vld [vmem:[%s1 + $0x4] sm:$0xf]
  %v31 = vld [vmem:[%s1 + $0x8] sm:$0xf]
  %v32 = vld [vmem:[%s1 + $0xc] sm:$0xf]
  %v33 = vld [vmem:[%s1 + $0x10] sm:$0xf]
  %v34 = vld [vmem:[%s1 + $0x14] sm:$0xf]
  %v35 = vld [vmem:[%s1 + $0x18] sm:$0xf]
  %v36 = vld [vmem:[%s1 + $0x1c] sm:$0xf]
  %v37 = vld [vmem:[%s1 + $0x20] sm:$0xf]
  %v38 = vld [vmem:[%s2] sm:$0x1]
  %v40 = vperm.slane %v38, 0
  %v51 = vunpack.c.l.b16 %v29
  %v52 = vunpack.c.l.b16 %v30
  %v53 = vunpack.c.l.b16 %v31
  %v54 = vunpack.c.l.b16 %v32
  %v55 = vunpack.c.l.b16 %v33
  %v56 = vunpack.c.l.b16 %v34
  %v57 = vunpack.c.l.b16 %v35
  %v58 = vunpack.c.l.b16 %v36
  %v59 = vunpack.c.l.b16 %v37
  %v60 = vpack.c.b16 %v52, %v51
  %v61 = vpack.c.b16 %v54, %v53
  %v62 = vpack.c.b16 %v56, %v55
  %v63 = vpack.c.b16 %v58, %v57
  %v64 = vpack.c.b16 %v59, %v59
  %vm69 = vcmask 588800
  %v71 = vsel %vm69, %v27, 0
  %v74 = vsel %vm69, %v28, 0
  %vm76 = vcmask 1043456
  %v78 = vsel %vm76, %v64, 0
  %80 = vmatpush.bf16.msra.mxu0 0
  %81 = vmatpush.bf16.msra.mxu0 0
  %82 = vmatpush.bf16.msra.mxu0 0
  %83 = vmatpush.bf16.msra.mxu0 %v78
  %84 = vmatpush.bf16.msra.mxu0 %v63
  %85 = vmatpush.bf16.msra.mxu0 %v62
  %86 = vmatpush.bf16.msra.mxu0 %v61
  %87 = vmatpush.bf16.msra.mxu0 %v60
  %88 = vmatmul.bf16.gmra.mxu0 %v71
  %v89 = vpop.f32.mrf.mxu0
  %v90 = vadd.f32 %v40, %v89
  %v91 = vpop.f32.mrf.mxu0
  %v92 = vadd.f32 %v40, %v91
  %93 = vmatmul.bf16.gmra.mxu0 %v74
  %v94 = vpop.f32.mrf.mxu0
  %v95 = vadd.f32 %v40, %v94
  %v96 = vpop.f32.mrf.mxu0
  %v97 = vadd.f32 %v40, %v96
  %98 = vdwg.mxu0
  %v99 = vmax.f32 %v90, 0.0
  %v100 = vmax.f32 %v92, 0.0
  %v101 = vmax.f32 %v95, 0.0
  %v102 = vmax.f32 %v97, 0.0
  %v103 = vpack.c.bf16 %v99, %v99
  %v104 = vpack.c.bf16 %v100, %v100
  %v105 = vpack.c.bf16 %v101, %v101
  %v106 = vpack.c.bf16 %v102, %v102
  %107 = vst [vmem:[%s3] sm:$0xf] %v103
  %108 = vst [vmem:[%s3 + $0x4] sm:$0xf] %v104
  %109 = vst [vmem:[%s3 + $0x8] sm:$0xf] %v105
  %110 = vst [vmem:[%s3 + $0xc] sm:$0xf] %v106
  // Predicated region
  $region14: #{model_sep_forward.16} parent=0 // pred_check
    _
  $region15: #{model_sep_forward.16} parent=0 // pred_check_branch
    %112 = sbr.rel (0) target = $region17
  $region16: #{model_sep_forward.16} parent=0 // pred_region
    _
  $region17: #{model_sep_forward.16} parent=0 // pred_fallthru
    _
  // Predicated region
  $region18: #{model_sep_forward.16} parent=0 // pred_check
    _
  $region19: #{model_sep_forward.16} parent=0 // pred_check_branch
    %114 = sbr.rel (0) target = $region21
  $region20: #{model_sep_forward.16} parent=0 // pred_region
    _
  $region21: #{model_sep_forward.16} parent=0 // pred_fallthru
    _

// kernel: model_sep_forward.17
$region0: #{model_sep_forward.17}
  #allocation0 [shape = 'u32[]', space=smem, size = 0x4, offset = 0x4, fixed_abs, tag = 'smem constant byte address 0x4 - core index']
  #allocation1 [shape = 'u32[72,128]{1,0:T(1,128)}', space=vmem, size = 0x9000, scoped, tag = 'internal scratch']
  %s0 = inlined_call_operand.vmem [shape: bf16[128,36], index: 0, kind: input, shape index: {}]
  %s1 = inlined_call_operand.vmem [shape: bf16[36,128], index: 1, kind: input, shape index: {}]
  %s2 = inlined_call_operand.vmem [shape: f32[1,128], index: 2, kind: input, shape index: {}]
  %s3 = inlined_call_operand.vmem [shape: f32[128,128], index: 3, kind: output, shape index: {}]
  %s4 = sld [smem:[#allocation0]]
  $region22: #{model_sep_forward.17} parent=0
    _
  %s6 = ssub.s32 1, %s4
  %s7 = scalar_select 0, %s6, %s4
  // Predicated region
  $region2: #{model_sep_forward.17} parent=0 // pred_check
    _
  $region3: #{model_sep_forward.17} parent=0 // pred_check_branch
    %9 = sbr.rel (0) target = $region5
  $region4: #{model_sep_forward.17} parent=0 // pred_region
    _
  $region5: #{model_sep_forward.17} parent=0 // pred_fallthru
    _
  // Predicated region
  $region6: #{model_sep_forward.17} parent=0 // pred_check
    _
  $region7: #{model_sep_forward.17} parent=0 // pred_check_branch
    %11 = sbr.rel (0) target = $region9
  $region8: #{model_sep_forward.17} parent=0 // pred_region
    _
  $region9: #{model_sep_forward.17} parent=0 // pred_fallthru
    _
  // Predicated region
  $region10: #{model_sep_forward.17} parent=0 // pred_check
    _
  $region11: #{model_sep_forward.17} parent=0 // pred_check_branch
    %13 = sbr.rel (0) target = $region13
  $region12: #{model_sep_forward.17} parent=0 // pred_region
    _
  $region13: #{model_sep_forward.17} parent=0 // pred_fallthru
    _
  %v15 = vld [vmem:[%s0] sm:$0xf]
  %v16 = vld [vmem:[%s0 + $0x4] sm:$0xf]
  %v17 = vld [vmem:[%s0 + $0x8] sm:$0xf]
  %v18 = vld [vmem:[%s0 + $0xc] sm:$0xf]
  %v19 = vld [vmem:[%s0 + $0x10] sm:$0xf]
  %v20 = vld [vmem:[%s0 + $0x14] sm:$0xf]
  %v21 = vld [vmem:[%s0 + $0x18] sm:$0xf]
  %v22 = vld [vmem:[%s0 + $0x1c] sm:$0xf]
  %v23 = vld [vmem:[%s0 + $0x20] sm:$0xf]
  %v24 = vld [vmem:[%s0 + $0x24] sm:$0xf]
  %v25 = vld [vmem:[%s0 + $0x28] sm:$0xf]
  %v26 = vld [vmem:[%s0 + $0x2c] sm:$0xf]
  %v27 = vld [vmem:[%s0 + $0x30] sm:$0xf]
  %v28 = vld [vmem:[%s0 + $0x34] sm:$0xf]
  %v29 = vld [vmem:[%s0 + $0x38] sm:$0xf]
  %v30 = vld [vmem:[%s0 + $0x3c] sm:$0xf]
  %v31 = vld [vmem:[%s1] sm:$0xf]
  %v32 = vld [vmem:[%s1 + $0x4] sm:$0xf]
  %v33 = vld [vmem:[%s1 + $0x8] sm:$0xf]
  %v34 = vld [vmem:[%s1 + $0xc] sm:$0xf]
  %v35 = vld [vmem:[%s1 + $0x10] sm:$0x3]
  %v36 = vld [vmem:[%s2] sm:$0x1]
  %v38 = vperm.slane %v36, 0
  %v56 = vunpack.c.l.b16 %v15
  %v57 = vunpack.c.l.b16 %v16
  %v58 = vunpack.c.l.b16 %v17
  %v59 = vunpack.c.l.b16 %v18
  %v60 = vunpack.c.l.b16 %v19
  %v61 = vunpack.c.l.b16 %v20
  %v62 = vunpack.c.l.b16 %v21
  %v63 = vunpack.c.l.b16 %v22
  %v64 = vunpack.c.l.b16 %v23
  %v65 = vunpack.c.l.b16 %v24
  %v66 = vunpack.c.l.b16 %v25
  %v67 = vunpack.c.l.b16 %v26
  %v68 = vunpack.c.l.b16 %v27
  %v69 = vunpack.c.l.b16 %v28
  %v70 = vunpack.c.l.b16 %v29
  %v71 = vunpack.c.l.b16 %v30
  %v72 = vpack.c.b16 %v57, %v56
  %v73 = vpack.c.b16 %v59, %v58
  %v74 = vpack.c.b16 %v61, %v60
  %v75 = vpack.c.b16 %v63, %v62
  %v76 = vpack.c.b16 %v65, %v64
  %v77 = vpack.c.b16 %v67, %v66
  %v78 = vpack.c.b16 %v69, %v68
  %v79 = vpack.c.b16 %v71, %v70
  %v85 = vunpack.c.l.b16 %v31
  %v86 = vunpack.c.l.b16 %v32
  %v87 = vunpack.c.l.b16 %v33
  %v88 = vunpack.c.l.b16 %v34
  %v89 = vunpack.c.l.b16 %v35
  %v90 = vpack.c.b16 %v86, %v85
  %v91 = vpack.c.b16 %v88, %v87
  %v92 = vpack.c.b16 %v89, %v89
  %vm95 = vcmask 293888
  %v97 = vsel %vm95, %v72, 0
  %v100 = vsel %vm95, %v73, 0
  %v103 = vsel %vm95, %v74, 0
  %v106 = vsel %vm95, %v75, 0
  %v109 = vsel %vm95, %v76, 0
  %v112 = vsel %vm95, %v77, 0
  %v115 = vsel %vm95, %v78, 0
  %v118 = vsel %vm95, %v79, 0
  %vm120 = vcmask 1041408
  %v122 = vsel %vm120, %v92, 0
  %124 = vmatpush.bf16.msra.mxu0 0
  %125 = vmatpush.bf16.msra.mxu0 0
  %126 = vmatpush.bf16.msra.mxu0 0
  %127 = vmatpush.bf16.msra.mxu0 0
  %128 = vmatpush.bf16.msra.mxu0 0
  %129 = vmatpush.bf16.msra.mxu0 %v122
  %130 = vmatpush.bf16.msra.mxu0 %v91
  %131 = vmatpush.bf16.msra.mxu0 %v90
  %132 = vmatmul.bf16.gmra.mxu0 %v97
  %v133 = vpop.f32.mrf.mxu0
  %v134 = vadd.f32 %v38, %v133
  %v135 = vpop.f32.mrf.mxu0
  %v136 = vadd.f32 %v38, %v135
  %137 = vmatmul.bf16.gmra.mxu0 %v100
  %v138 = vpop.f32.mrf.mxu0
  %v139 = vadd.f32 %v38, %v138
  %v140 = vpop.f32.mrf.mxu0
  %v141 = vadd.f32 %v38, %v140
  %142 = vmatmul.bf16.gmra.mxu0 %v103
  %v143 = vpop.f32.mrf.mxu0
  %v144 = vadd.f32 %v38, %v143
  %v145 = vpop.f32.mrf.mxu0
  %v146 = vadd.f32 %v38, %v145
  %147 = vmatmul.bf16.gmra.mxu0 %v106
  %v148 = vpop.f32.mrf.mxu0
  %v149 = vadd.f32 %v38, %v148
  %v150 = vpop.f32.mrf.mxu0
  %v151 = vadd.f32 %v38, %v150
  %152 = vmatmul.bf16.gmra.mxu0 %v109
  %v153 = vpop.f32.mrf.mxu0
  %v154 = vadd.f32 %v38, %v153
  %v155 = vpop.f32.mrf.mxu0
  %v156 = vadd.f32 %v38, %v155
  %157 = vmatmul.bf16.gmra.mxu0 %v112
  %v158 = vpop.f32.mrf.mxu0
  %v159 = vadd.f32 %v38, %v158
  %v160 = vpop.f32.mrf.mxu0
  %v161 = vadd.f32 %v38, %v160
  %162 = vmatmul.bf16.gmra.mxu0 %v115
  %v163 = vpop.f32.mrf.mxu0
  %v164 = vadd.f32 %v38, %v163
  %v165 = vpop.f32.mrf.mxu0
  %v166 = vadd.f32 %v38, %v165
  %167 = vmatmul.bf16.gmra.mxu0 %v118
  %v168 = vpop.f32.mrf.mxu0
  %v169 = vadd.f32 %v38, %v168
  %v170 = vpop.f32.mrf.mxu0
  %v171 = vadd.f32 %v38, %v170
  %172 = vdwg.mxu0
  %173 = vst [vmem:[%s3] sm:$0xff] %v134
  %174 = vst [vmem:[%s3 + $0x8] sm:$0xff] %v136
  %175 = vst [vmem:[%s3 + $0x10] sm:$0xff] %v139
  %176 = vst [vmem:[%s3 + $0x18] sm:$0xff] %v141
  %177 = vst [vmem:[%s3 + $0x20] sm:$0xff] %v144
  %178 = vst [vmem:[%s3 + $0x28] sm:$0xff] %v146
  %179 = vst [vmem:[%s3 + $0x30] sm:$0xff] %v149
  %180 = vst [vmem:[%s3 + $0x38] sm:$0xff] %v151
  %181 = vst [vmem:[%s3 + $0x40] sm:$0xff] %v154
  %182 = vst [vmem:[%s3 + $0x48] sm:$0xff] %v156
  %183 = vst [vmem:[%s3 + $0x50] sm:$0xff] %v159
  %184 = vst [vmem:[%s3 + $0x58] sm:$0xff] %v161
  %185 = vst [vmem:[%s3 + $0x60] sm:$0xff] %v164
  %186 = vst [vmem:[%s3 + $0x68] sm:$0xff] %v166
  %187 = vst [vmem:[%s3 + $0x70] sm:$0xff] %v169
  %188 = vst [vmem:[%s3 + $0x78] sm:$0xff] %v171
  // Predicated region
  $region14: #{model_sep_forward.17} parent=0 // pred_check
    _
  $region15: #{model_sep_forward.17} parent=0 // pred_check_branch
    %190 = sbr.rel (0) target = $region17
  $region16: #{model_sep_forward.17} parent=0 // pred_region
    _
  $region17: #{model_sep_forward.17} parent=0 // pred_fallthru
    _
  // Predicated region
  $region18: #{model_sep_forward.17} parent=0 // pred_check
    _
  $region19: #{model_sep_forward.17} parent=0 // pred_check_branch
    %192 = sbr.rel (0) target = $region21
  $region20: #{model_sep_forward.17} parent=0 // pred_region
    _
  $region21: #{model_sep_forward.17} parent=0 // pred_fallthru
    _

</llo_original>
